<compile_context>
chip_gen: v5e
topology: v5e:2x2
jax: 0.10.0
libtpu: 0.0.40
codegen_flags: <defaults>
</compile_context>

<pallas_src>
import jax
import jax.numpy as jnp
import numpy as np
from jax.experimental import pallas as pl
from jax.experimental.pallas import tpu as pltpu


def _dma_gather_kernel(idx_ref, x_hbm, o_ref, sem):
    """o[r_local, b, :] = x[idx[r_base + r_local, b], b, :] via row DMAs.

    idx_ref : SMEM int32 (remain_T, B)    scalar-prefetched kept-row indices
    x_hbm   : HBM (ANY)  (T, B, C)        full sequence, never bulk-copied
    o_ref   : VMEM       (block_r, B, C)  output tile, native (row, batch, C) layout
    sem     : DMA semaphores, shape (B,)
    """
    block_r, B, _ = o_ref.shape
    remain_T = idx_ref.shape[0]
    r_base = pl.program_id(0) * block_r

    # Start every row copy of this tile first (block_r * B DMAs in flight),
    # then wait.  Rows past remain_T in the ragged last tile are clamped to a
    # valid row; Pallas clips their HBM writeback.
    copies = []
    for r_local in range(block_r):
        r = jnp.minimum(r_base + r_local, remain_T - 1)
        for b in range(B):
            t = idx_ref[r, b]
            cp = pltpu.make_async_copy(
                x_hbm.at[t, pl.ds(b, 1), :],        # (1, C) contiguous HBM strip
                o_ref.at[r_local, pl.ds(b, 1), :],  # (1, C) strip in the VMEM tile
                sem.at[b],
            )
            cp.start()
            copies.append(cp)
    for cp in copies:
        cp.wait()


def _pallas_gather_kept(patches, idx_kept, remain_T, block_r=None):
    """Gather kept rows with the Pallas DMA kernel.

    patches  : (T, B, C)
    idx_kept : (remain_T, B) int32 kept-row indices (forward_indexes[:remain_T])
    returns  : (remain_T, B, C)
    """
    T, B, C = patches.shape
    itemsize = patches.dtype.itemsize
    row_bytes = B * C * itemsize  # one output row (all batches)

    if block_r is None:
        # >= ~4 grid steps (pipelining + v7x megacore sharding), <= 8 rows/step.
        block_r = max(1, min(8, pl.cdiv(remain_T, 4)))
    block_r = max(1, min(block_r, remain_T))
    # Cap the output tile so double-buffering stays well inside v7x's 64 MiB VMEM.
    while block_r > 1 and block_r * row_bytes > (12 << 20):
        block_r -= 1

    out_block_bytes = block_r * row_bytes
    vmem_limit = int(min(96 << 20, max(8 << 20, 2 * out_block_bytes + (2 << 20))))

    grid = (pl.cdiv(remain_T, block_r),)

    return pl.pallas_call(
        _dma_gather_kernel,
        out_shape=jax.ShapeDtypeStruct((remain_T, B, C), patches.dtype),
        grid_spec=pltpu.PrefetchScalarGridSpec(
            num_scalar_prefetch=1,                       # kept indices -> SMEM
            grid=grid,
            in_specs=[pl.BlockSpec(memory_space=pl.ANY)],  # x stays in HBM
            out_specs=pl.BlockSpec((block_r, B, C), lambda i, idx: (i, 0, 0)),
            scratch_shapes=[pltpu.SemaphoreType.DMA((B,))],
        ),
        compiler_params=pltpu.CompilerParams(
            dimension_semantics=("parallel",),
            vmem_limit_bytes=vmem_limit,
        ),
    )(idx_kept, patches)


def patch_shuffle(patches, key, ratio, *, block_r=None, use_pallas=None):
    """JAX/Pallas equivalent of PatchShuffle.forward.

    patches: (T, B, C)
    Returns (patches_kept (remain_T, B, C),
             forward_indexes (T, B) int32,
             backward_indexes (T, B) int32).
    """
    T, B, C = patches.shape
    remain_T = int(T * (1 - ratio))

    # Deterministic per-batch random permutations (replaces np.random.shuffle).
    keys = jax.random.split(key, B)
    fwd_bt = jax.vmap(lambda k: jax.random.permutation(k, T))(keys).astype(jnp.int32)  # (B, T)
    bwd_bt = jnp.argsort(fwd_bt, axis=-1).astype(jnp.int32)                            # (B, T)
    forward_indexes = fwd_bt.T    # (T, B)
    backward_indexes = bwd_bt.T   # (T, B)

    if remain_T <= 0:
        return patches[:0], forward_indexes, backward_indexes

    # Kept indices already come out in the native (remain_T, B) layout.
    idx_kept = forward_indexes[:remain_T]

    if use_pallas is None:
        # Tiny problems / tiny rows: a fused XLA gather beats kernel-launch and
        # per-row DMA overhead (perf-review item: gate the kernel on size).
        row_bytes = C * patches.dtype.itemsize
        use_pallas = (
            remain_T * B * C * patches.dtype.itemsize >= (1 << 20) and row_bytes >= 512
        )

    if use_pallas:
        kept = _pallas_gather_kept(patches, idx_kept, remain_T, block_r=block_r)
    else:
        kept = jnp.take_along_axis(patches, idx_kept[:, :, None], axis=0)

    return kept, forward_indexes, backward_indexes


if __name__ == "__main__":
    key = jax.random.PRNGKey(0)
    k_data, k_perm, k_data2, k_perm2 = jax.random.split(key, 4)

    # Small but lane-dense shapes: C = 256 f32 -> 1 KiB contiguous rows,
    # B = 16, T = 16, ratio = 0.75 -> remain_T = 4 (grid of 4 pipelined steps).
    T, B, C = 16, 16, 256
    ratio = 0.75
    remain_T = int(T * (1 - ratio))
    patches = jax.random.normal(k_data, (T, B, C), dtype=jnp.float32)

    kept, fwd_idx, bwd_idx = patch_shuffle(patches, k_perm, ratio, use_pallas=True)
    kept = jax.block_until_ready(kept)

    # Pure-JAX reference of take_indexes + truncation; the DMA gather is exact.
    expected = jnp.take_along_axis(patches, fwd_idx[:remain_T][:, :, None], axis=0)
    np.testing.assert_array_equal(np.asarray(kept), np.asarray(expected))
    assert kept.shape == (remain_T, B, C)
    assert fwd_idx.shape == (T, B) and bwd_idx.shape == (T, B)

    # backward_indexes really inverts forward_indexes (per batch column).
    np.testing.assert_array_equal(
        np.take_along_axis(np.asarray(fwd_idx), np.asarray(bwd_idx), axis=0),
        np.tile(np.arange(T)[:, None], (1, B)),
    )

    # Ragged last tile: remain_T = 6 with a forced block_r = 4 (grid = (2,),
    # second tile half out-of-range) exercises the clamp + writeback-clipping path.
    T2, B2, C2 = 12, 8, 128
    ratio2 = 0.5
    remain_T2 = int(T2 * (1 - ratio2))
    patches2 = jax.random.normal(k_data2, (T2, B2, C2), dtype=jnp.float32)
    kept2, fwd2, _ = patch_shuffle(patches2, k_perm2, ratio2, block_r=4, use_pallas=True)
    kept2 = jax.block_until_ready(kept2)
    expected2 = jnp.take_along_axis(patches2, fwd2[:remain_T2][:, :, None], axis=0)
    np.testing.assert_array_equal(np.asarray(kept2), np.asarray(expected2))
    assert kept2.shape == (remain_T2, B2, C2)

    print("KERNEL_OK")
</pallas_src>

<mosaic_0001>
module attributes {stable_mosaic.version = 11 : i64} {
  func.func @_dma_gather_kernel(%arg0: i32, %arg1: memref<4x16xi32, #tpu.memory_space<smem>>, %arg2: memref<16x16x256xf32, #tpu.memory_space<any>>, %arg3: memref<1x16x256xf32, #tpu.memory_space<vmem>>, %arg4: memref<16x!tpu.dma_semaphore, #tpu.memory_space<semaphore_mem>>) attributes {dimension_semantics = [#tpu.dimension_semantics<parallel>], iteration_bounds = array<i64: 4>, scalar_prefetch = 1 : i64, scratch_operands = 1 : i64, tpu.core_type = #tpu.core_type<tc>, window_params = [{}, {transform_indices = @transform_1, window_bounds = array<i64: 1, 16, 256>}]} {
    %c1_i32 = arith.constant 1 : i32
    %0 = arith.muli %arg0, %c1_i32 : i32
    %c0_i32 = arith.constant 0 : i32
    %1 = arith.addi %0, %c0_i32 : i32
    %c3_i32 = arith.constant 3 : i32
    %2 = arith.minsi %1, %c3_i32 : i32
    %3 = arith.index_cast %2 : i32 to index
    %c0 = arith.constant 0 : index
    %4 = memref.load %arg1[%3, %c0] : memref<4x16xi32, #tpu.memory_space<smem>>
    %c0_i32_0 = arith.constant 0 : i32
    %c0_i32_1 = arith.constant 0 : i32
    %c0_i32_2 = arith.constant 0 : i32
    %c0_i32_3 = arith.constant 0 : i32
    %5 = tpu.memref_slice %arg2[%4, %c0_i32_2, %c0_i32_3] : memref<16x16x256xf32, #tpu.memory_space<any>> -> memref<1x1x256xf32, #tpu.memory_space<any>>
    %6 = tpu.memref_squeeze %5 : memref<1x1x256xf32, #tpu.memory_space<any>> -> memref<1x256xf32, #tpu.memory_space<any>>
    %c0_i32_4 = arith.constant 0 : i32
    %c0_i32_5 = arith.constant 0 : i32
    %7 = tpu.memref_slice %arg3[%c0_i32_0, %c0_i32_4, %c0_i32_5] : memref<1x16x256xf32, #tpu.memory_space<vmem>> -> memref<1x1x256xf32, #tpu.memory_space<vmem>>
    %8 = tpu.memref_squeeze %7 : memref<1x1x256xf32, #tpu.memory_space<vmem>> -> memref<1x256xf32, #tpu.memory_space<vmem>>
    %9 = tpu.memref_slice %arg4[%c0_i32_1] : memref<16x!tpu.dma_semaphore, #tpu.memory_space<semaphore_mem>> -> memref<1x!tpu.dma_semaphore, #tpu.memory_space<semaphore_mem>>
    %10 = tpu.memref_squeeze %9 : memref<1x!tpu.dma_semaphore, #tpu.memory_space<semaphore_mem>> -> memref<!tpu.dma_semaphore, #tpu.memory_space<semaphore_mem>>
    tpu.enqueue_dma source(%6 : memref<1x256xf32, #tpu.memory_space<any>>) target(%8 : memref<1x256xf32, #tpu.memory_space<vmem>>) target_semaphore(%10 : memref<!tpu.dma_semaphore, #tpu.memory_space<semaphore_mem>>)
    %11 = arith.index_cast %2 : i32 to index
    %c1 = arith.constant 1 : index
    %12 = memref.load %arg1[%11, %c1] : memref<4x16xi32, #tpu.memory_space<smem>>
    %c0_i32_6 = arith.constant 0 : i32
    %c1_i32_7 = arith.constant 1 : i32
    %c1_i32_8 = arith.constant 1 : i32
    %c0_i32_9 = arith.constant 0 : i32
    %13 = tpu.memref_slice %arg2[%12, %c1_i32_8, %c0_i32_9] : memref<16x16x256xf32, #tpu.memory_space<any>> -> memref<1x1x256xf32, #tpu.memory_space<any>>
    %14 = tpu.memref_squeeze %13 : memref<1x1x256xf32, #tpu.memory_space<any>> -> memref<1x256xf32, #tpu.memory_space<any>>
    %c1_i32_10 = arith.constant 1 : i32
    %c0_i32_11 = arith.constant 0 : i32
    %15 = tpu.memref_slice %arg3[%c0_i32_6, %c1_i32_10, %c0_i32_11] : memref<1x16x256xf32, #tpu.memory_space<vmem>> -> memref<1x1x256xf32, #tpu.memory_space<vmem>>
    %16 = tpu.memref_squeeze %15 : memref<1x1x256xf32, #tpu.memory_space<vmem>> -> memref<1x256xf32, #tpu.memory_space<vmem>>
    %17 = tpu.memref_slice %arg4[%c1_i32_7] : memref<16x!tpu.dma_semaphore, #tpu.memory_space<semaphore_mem>> -> memref<1x!tpu.dma_semaphore, #tpu.memory_space<semaphore_mem>>
    %18 = tpu.memref_squeeze %17 : memref<1x!tpu.dma_semaphore, #tpu.memory_space<semaphore_mem>> -> memref<!tpu.dma_semaphore, #tpu.memory_space<semaphore_mem>>
    tpu.enqueue_dma source(%14 : memref<1x256xf32, #tpu.memory_space<any>>) target(%16 : memref<1x256xf32, #tpu.memory_space<vmem>>) target_semaphore(%18 : memref<!tpu.dma_semaphore, #tpu.memory_space<semaphore_mem>>)
    %19 = arith.index_cast %2 : i32 to index
    %c2 = arith.constant 2 : index
    %20 = memref.load %arg1[%19, %c2] : memref<4x16xi32, #tpu.memory_space<smem>>
    %c0_i32_12 = arith.constant 0 : i32
    %c2_i32 = arith.constant 2 : i32
    %c2_i32_13 = arith.constant 2 : i32
    %c0_i32_14 = arith.constant 0 : i32
    %21 = tpu.memref_slice %arg2[%20, %c2_i32_13, %c0_i32_14] : memref<16x16x256xf32, #tpu.memory_space<any>> -> memref<1x1x256xf32, #tpu.memory_space<any>>
    %22 = tpu.memref_squeeze %21 : memref<1x1x256xf32, #tpu.memory_space<any>> -> memref<1x256xf32, #tpu.memory_space<any>>
    %c2_i32_15 = arith.constant 2 : i32
    %c0_i32_16 = arith.constant 0 : i32
    %23 = tpu.memref_slice %arg3[%c0_i32_12, %c2_i32_15, %c0_i32_16] : memref<1x16x256xf32, #tpu.memory_space<vmem>> -> memref<1x1x256xf32, #tpu.memory_space<vmem>>
    %24 = tpu.memref_squeeze %23 : memref<1x1x256xf32, #tpu.memory_space<vmem>> -> memref<1x256xf32, #tpu.memory_space<vmem>>
    %25 = tpu.memref_slice %arg4[%c2_i32] : memref<16x!tpu.dma_semaphore, #tpu.memory_space<semaphore_mem>> -> memref<1x!tpu.dma_semaphore, #tpu.memory_space<semaphore_mem>>
    %26 = tpu.memref_squeeze %25 : memref<1x!tpu.dma_semaphore, #tpu.memory_space<semaphore_mem>> -> memref<!tpu.dma_semaphore, #tpu.memory_space<semaphore_mem>>
    tpu.enqueue_dma source(%22 : memref<1x256xf32, #tpu.memory_space<any>>) target(%24 : memref<1x256xf32, #tpu.memory_space<vmem>>) target_semaphore(%26 : memref<!tpu.dma_semaphore, #tpu.memory_space<semaphore_mem>>)
    %27 = arith.index_cast %2 : i32 to index
    %c3 = arith.constant 3 : index
    %28 = memref.load %arg1[%27, %c3] : memref<4x16xi32, #tpu.memory_space<smem>>
    %c0_i32_17 = arith.constant 0 : i32
    %c3_i32_18 = arith.constant 3 : i32
    %c3_i32_19 = arith.constant 3 : i32
    %c0_i32_20 = arith.constant 0 : i32
    %29 = tpu.memref_slice %arg2[%28, %c3_i32_19, %c0_i32_20] : memref<16x16x256xf32, #tpu.memory_space<any>> -> memref<1x1x256xf32, #tpu.memory_space<any>>
    %30 = tpu.memref_squeeze %29 : memref<1x1x256xf32, #tpu.memory_space<any>> -> memref<1x256xf32, #tpu.memory_space<any>>
    %c3_i32_21 = arith.constant 3 : i32
    %c0_i32_22 = arith.constant 0 : i32
    %31 = tpu.memref_slice %arg3[%c0_i32_17, %c3_i32_21, %c0_i32_22] : memref<1x16x256xf32, #tpu.memory_space<vmem>> -> memref<1x1x256xf32, #tpu.memory_space<vmem>>
    %32 = tpu.memref_squeeze %31 : memref<1x1x256xf32, #tpu.memory_space<vmem>> -> memref<1x256xf32, #tpu.memory_space<vmem>>
    %33 = tpu.memref_slice %arg4[%c3_i32_18] : memref<16x!tpu.dma_semaphore, #tpu.memory_space<semaphore_mem>> -> memref<1x!tpu.dma_semaphore, #tpu.memory_space<semaphore_mem>>
    %34 = tpu.memref_squeeze %33 : memref<1x!tpu.dma_semaphore, #tpu.memory_space<semaphore_mem>> -> memref<!tpu.dma_semaphore, #tpu.memory_space<semaphore_mem>>
    tpu.enqueue_dma source(%30 : memref<1x256xf32, #tpu.memory_space<any>>) target(%32 : memref<1x256xf32, #tpu.memory_space<vmem>>) target_semaphore(%34 : memref<!tpu.dma_semaphore, #tpu.memory_space<semaphore_mem>>)
    %35 = arith.index_cast %2 : i32 to index
    %c4 = arith.constant 4 : index
    %36 = memref.load %arg1[%35, %c4] : memref<4x16xi32, #tpu.memory_space<smem>>
    %c0_i32_23 = arith.constant 0 : i32
    %c4_i32 = arith.constant 4 : i32
    %c4_i32_24 = arith.constant 4 : i32
    %c0_i32_25 = arith.constant 0 : i32
    %37 = tpu.memref_slice %arg2[%36, %c4_i32_24, %c0_i32_25] : memref<16x16x256xf32, #tpu.memory_space<any>> -> memref<1x1x256xf32, #tpu.memory_space<any>>
    %38 = tpu.memref_squeeze %37 : memref<1x1x256xf32, #tpu.memory_space<any>> -> memref<1x256xf32, #tpu.memory_space<any>>
    %c4_i32_26 = arith.constant 4 : i32
    %c0_i32_27 = arith.constant 0 : i32
    %39 = tpu.memref_slice %arg3[%c0_i32_23, %c4_i32_26, %c0_i32_27] : memref<1x16x256xf32, #tpu.memory_space<vmem>> -> memref<1x1x256xf32, #tpu.memory_space<vmem>>
    %40 = tpu.memref_squeeze %39 : memref<1x1x256xf32, #tpu.memory_space<vmem>> -> memref<1x256xf32, #tpu.memory_space<vmem>>
    %41 = tpu.memref_slice %arg4[%c4_i32] : memref<16x!tpu.dma_semaphore, #tpu.memory_space<semaphore_mem>> -> memref<1x!tpu.dma_semaphore, #tpu.memory_space<semaphore_mem>>
    %42 = tpu.memref_squeeze %41 : memref<1x!tpu.dma_semaphore, #tpu.memory_space<semaphore_mem>> -> memref<!tpu.dma_semaphore, #tpu.memory_space<semaphore_mem>>
    tpu.enqueue_dma source(%38 : memref<1x256xf32, #tpu.memory_space<any>>) target(%40 : memref<1x256xf32, #tpu.memory_space<vmem>>) target_semaphore(%42 : memref<!tpu.dma_semaphore, #tpu.memory_space<semaphore_mem>>)
    %43 = arith.index_cast %2 : i32 to index
    %c5 = arith.constant 5 : index
    %44 = memref.load %arg1[%43, %c5] : memref<4x16xi32, #tpu.memory_space<smem>>
    %c0_i32_28 = arith.constant 0 : i32
    %c5_i32 = arith.constant 5 : i32
    %c5_i32_29 = arith.constant 5 : i32
    %c0_i32_30 = arith.constant 0 : i32
    %45 = tpu.memref_slice %arg2[%44, %c5_i32_29, %c0_i32_30] : memref<16x16x256xf32, #tpu.memory_space<any>> -> memref<1x1x256xf32, #tpu.memory_space<any>>
    %46 = tpu.memref_squeeze %45 : memref<1x1x256xf32, #tpu.memory_space<any>> -> memref<1x256xf32, #tpu.memory_space<any>>
    %c5_i32_31 = arith.constant 5 : i32
    %c0_i32_32 = arith.constant 0 : i32
    %47 = tpu.memref_slice %arg3[%c0_i32_28, %c5_i32_31, %c0_i32_32] : memref<1x16x256xf32, #tpu.memory_space<vmem>> -> memref<1x1x256xf32, #tpu.memory_space<vmem>>
    %48 = tpu.memref_squeeze %47 : memref<1x1x256xf32, #tpu.memory_space<vmem>> -> memref<1x256xf32, #tpu.memory_space<vmem>>
    %49 = tpu.memref_slice %arg4[%c5_i32] : memref<16x!tpu.dma_semaphore, #tpu.memory_space<semaphore_mem>> -> memref<1x!tpu.dma_semaphore, #tpu.memory_space<semaphore_mem>>
    %50 = tpu.memref_squeeze %49 : memref<1x!tpu.dma_semaphore, #tpu.memory_space<semaphore_mem>> -> memref<!tpu.dma_semaphore, #tpu.memory_space<semaphore_mem>>
    tpu.enqueue_dma source(%46 : memref<1x256xf32, #tpu.memory_space<any>>) target(%48 : memref<1x256xf32, #tpu.memory_space<vmem>>) target_semaphore(%50 : memref<!tpu.dma_semaphore, #tpu.memory_space<semaphore_mem>>)
    %51 = arith.index_cast %2 : i32 to index
    %c6 = arith.constant 6 : index
    %52 = memref.load %arg1[%51, %c6] : memref<4x16xi32, #tpu.memory_space<smem>>
    %c0_i32_33 = arith.constant 0 : i32
    %c6_i32 = arith.constant 6 : i32
    %c6_i32_34 = arith.constant 6 : i32
    %c0_i32_35 = arith.constant 0 : i32
    %53 = tpu.memref_slice %arg2[%52, %c6_i32_34, %c0_i32_35] : memref<16x16x256xf32, #tpu.memory_space<any>> -> memref<1x1x256xf32, #tpu.memory_space<any>>
    %54 = tpu.memref_squeeze %53 : memref<1x1x256xf32, #tpu.memory_space<any>> -> memref<1x256xf32, #tpu.memory_space<any>>
    %c6_i32_36 = arith.constant 6 : i32
    %c0_i32_37 = arith.constant 0 : i32
    %55 = tpu.memref_slice %arg3[%c0_i32_33, %c6_i32_36, %c0_i32_37] : memref<1x16x256xf32, #tpu.memory_space<vmem>> -> memref<1x1x256xf32, #tpu.memory_space<vmem>>
    %56 = tpu.memref_squeeze %55 : memref<1x1x256xf32, #tpu.memory_space<vmem>> -> memref<1x256xf32, #tpu.memory_space<vmem>>
    %57 = tpu.memref_slice %arg4[%c6_i32] : memref<16x!tpu.dma_semaphore, #tpu.memory_space<semaphore_mem>> -> memref<1x!tpu.dma_semaphore, #tpu.memory_space<semaphore_mem>>
    %58 = tpu.memref_squeeze %57 : memref<1x!tpu.dma_semaphore, #tpu.memory_space<semaphore_mem>> -> memref<!tpu.dma_semaphore, #tpu.memory_space<semaphore_mem>>
    tpu.enqueue_dma source(%54 : memref<1x256xf32, #tpu.memory_space<any>>) target(%56 : memref<1x256xf32, #tpu.memory_space<vmem>>) target_semaphore(%58 : memref<!tpu.dma_semaphore, #tpu.memory_space<semaphore_mem>>)
    %59 = arith.index_cast %2 : i32 to index
    %c7 = arith.constant 7 : index
    %60 = memref.load %arg1[%59, %c7] : memref<4x16xi32, #tpu.memory_space<smem>>
    %c0_i32_38 = arith.constant 0 : i32
    %c7_i32 = arith.constant 7 : i32
    %c7_i32_39 = arith.constant 7 : i32
    %c0_i32_40 = arith.constant 0 : i32
    %61 = tpu.memref_slice %arg2[%60, %c7_i32_39, %c0_i32_40] : memref<16x16x256xf32, #tpu.memory_space<any>> -> memref<1x1x256xf32, #tpu.memory_space<any>>
    %62 = tpu.memref_squeeze %61 : memref<1x1x256xf32, #tpu.memory_space<any>> -> memref<1x256xf32, #tpu.memory_space<any>>
    %c7_i32_41 = arith.constant 7 : i32
    %c0_i32_42 = arith.constant 0 : i32
    %63 = tpu.memref_slice %arg3[%c0_i32_38, %c7_i32_41, %c0_i32_42] : memref<1x16x256xf32, #tpu.memory_space<vmem>> -> memref<1x1x256xf32, #tpu.memory_space<vmem>>
    %64 = tpu.memref_squeeze %63 : memref<1x1x256xf32, #tpu.memory_space<vmem>> -> memref<1x256xf32, #tpu.memory_space<vmem>>
    %65 = tpu.memref_slice %arg4[%c7_i32] : memref<16x!tpu.dma_semaphore, #tpu.memory_space<semaphore_mem>> -> memref<1x!tpu.dma_semaphore, #tpu.memory_space<semaphore_mem>>
    %66 = tpu.memref_squeeze %65 : memref<1x!tpu.dma_semaphore, #tpu.memory_space<semaphore_mem>> -> memref<!tpu.dma_semaphore, #tpu.memory_space<semaphore_mem>>
    tpu.enqueue_dma source(%62 : memref<1x256xf32, #tpu.memory_space<any>>) target(%64 : memref<1x256xf32, #tpu.memory_space<vmem>>) target_semaphore(%66 : memref<!tpu.dma_semaphore, #tpu.memory_space<semaphore_mem>>)
    %67 = arith.index_cast %2 : i32 to index
    %c8 = arith.constant 8 : index
    %68 = memref.load %arg1[%67, %c8] : memref<4x16xi32, #tpu.memory_space<smem>>
    %c0_i32_43 = arith.constant 0 : i32
    %c8_i32 = arith.constant 8 : i32
    %c8_i32_44 = arith.constant 8 : i32
    %c0_i32_45 = arith.constant 0 : i32
    %69 = tpu.memref_slice %arg2[%68, %c8_i32_44, %c0_i32_45] : memref<16x16x256xf32, #tpu.memory_space<any>> -> memref<1x1x256xf32, #tpu.memory_space<any>>
    %70 = tpu.memref_squeeze %69 : memref<1x1x256xf32, #tpu.memory_space<any>> -> memref<1x256xf32, #tpu.memory_space<any>>
    %c8_i32_46 = arith.constant 8 : i32
    %c0_i32_47 = arith.constant 0 : i32
    %71 = tpu.memref_slice %arg3[%c0_i32_43, %c8_i32_46, %c0_i32_47] : memref<1x16x256xf32, #tpu.memory_space<vmem>> -> memref<1x1x256xf32, #tpu.memory_space<vmem>>
    %72 = tpu.memref_squeeze %71 : memref<1x1x256xf32, #tpu.memory_space<vmem>> -> memref<1x256xf32, #tpu.memory_space<vmem>>
    %73 = tpu.memref_slice %arg4[%c8_i32] : memref<16x!tpu.dma_semaphore, #tpu.memory_space<semaphore_mem>> -> memref<1x!tpu.dma_semaphore, #tpu.memory_space<semaphore_mem>>
    %74 = tpu.memref_squeeze %73 : memref<1x!tpu.dma_semaphore, #tpu.memory_space<semaphore_mem>> -> memref<!tpu.dma_semaphore, #tpu.memory_space<semaphore_mem>>
    tpu.enqueue_dma source(%70 : memref<1x256xf32, #tpu.memory_space<any>>) target(%72 : memref<1x256xf32, #tpu.memory_space<vmem>>) target_semaphore(%74 : memref<!tpu.dma_semaphore, #tpu.memory_space<semaphore_mem>>)
    %75 = arith.index_cast %2 : i32 to index
    %c9 = arith.constant 9 : index
    %76 = memref.load %arg1[%75, %c9] : memref<4x16xi32, #tpu.memory_space<smem>>
    %c0_i32_48 = arith.constant 0 : i32
    %c9_i32 = arith.constant 9 : i32
    %c9_i32_49 = arith.constant 9 : i32
    %c0_i32_50 = arith.constant 0 : i32
    %77 = tpu.memref_slice %arg2[%76, %c9_i32_49, %c0_i32_50] : memref<16x16x256xf32, #tpu.memory_space<any>> -> memref<1x1x256xf32, #tpu.memory_space<any>>
    %78 = tpu.memref_squeeze %77 : memref<1x1x256xf32, #tpu.memory_space<any>> -> memref<1x256xf32, #tpu.memory_space<any>>
    %c9_i32_51 = arith.constant 9 : i32
    %c0_i32_52 = arith.constant 0 : i32
    %79 = tpu.memref_slice %arg3[%c0_i32_48, %c9_i32_51, %c0_i32_52] : memref<1x16x256xf32, #tpu.memory_space<vmem>> -> memref<1x1x256xf32, #tpu.memory_space<vmem>>
    %80 = tpu.memref_squeeze %79 : memref<1x1x256xf32, #tpu.memory_space<vmem>> -> memref<1x256xf32, #tpu.memory_space<vmem>>
    %81 = tpu.memref_slice %arg4[%c9_i32] : memref<16x!tpu.dma_semaphore, #tpu.memory_space<semaphore_mem>> -> memref<1x!tpu.dma_semaphore, #tpu.memory_space<semaphore_mem>>
    %82 = tpu.memref_squeeze %81 : memref<1x!tpu.dma_semaphore, #tpu.memory_space<semaphore_mem>> -> memref<!tpu.dma_semaphore, #tpu.memory_space<semaphore_mem>>
    tpu.enqueue_dma source(%78 : memref<1x256xf32, #tpu.memory_space<any>>) target(%80 : memref<1x256xf32, #tpu.memory_space<vmem>>) target_semaphore(%82 : memref<!tpu.dma_semaphore, #tpu.memory_space<semaphore_mem>>)
    %83 = arith.index_cast %2 : i32 to index
    %c10 = arith.constant 10 : index
    %84 = memref.load %arg1[%83, %c10] : memref<4x16xi32, #tpu.memory_space<smem>>
    %c0_i32_53 = arith.constant 0 : i32
    %c10_i32 = arith.constant 10 : i32
    %c10_i32_54 = arith.constant 10 : i32
    %c0_i32_55 = arith.constant 0 : i32
    %85 = tpu.memref_slice %arg2[%84, %c10_i32_54, %c0_i32_55] : memref<16x16x256xf32, #tpu.memory_space<any>> -> memref<1x1x256xf32, #tpu.memory_space<any>>
    %86 = tpu.memref_squeeze %85 : memref<1x1x256xf32, #tpu.memory_space<any>> -> memref<1x256xf32, #tpu.memory_space<any>>
    %c10_i32_56 = arith.constant 10 : i32
    %c0_i32_57 = arith.constant 0 : i32
    %87 = tpu.memref_slice %arg3[%c0_i32_53, %c10_i32_56, %c0_i32_57] : memref<1x16x256xf32, #tpu.memory_space<vmem>> -> memref<1x1x256xf32, #tpu.memory_space<vmem>>
    %88 = tpu.memref_squeeze %87 : memref<1x1x256xf32, #tpu.memory_space<vmem>> -> memref<1x256xf32, #tpu.memory_space<vmem>>
    %89 = tpu.memref_slice %arg4[%c10_i32] : memref<16x!tpu.dma_semaphore, #tpu.memory_space<semaphore_mem>> -> memref<1x!tpu.dma_semaphore, #tpu.memory_space<semaphore_mem>>
    %90 = tpu.memref_squeeze %89 : memref<1x!tpu.dma_semaphore, #tpu.memory_space<semaphore_mem>> -> memref<!tpu.dma_semaphore, #tpu.memory_space<semaphore_mem>>
    tpu.enqueue_dma source(%86 : memref<1x256xf32, #tpu.memory_space<any>>) target(%88 : memref<1x256xf32, #tpu.memory_space<vmem>>) target_semaphore(%90 : memref<!tpu.dma_semaphore, #tpu.memory_space<semaphore_mem>>)
    %91 = arith.index_cast %2 : i32 to index
    %c11 = arith.constant 11 : index
    %92 = memref.load %arg1[%91, %c11] : memref<4x16xi32, #tpu.memory_space<smem>>
    %c0_i32_58 = arith.constant 0 : i32
    %c11_i32 = arith.constant 11 : i32
    %c11_i32_59 = arith.constant 11 : i32
    %c0_i32_60 = arith.constant 0 : i32
    %93 = tpu.memref_slice %arg2[%92, %c11_i32_59, %c0_i32_60] : memref<16x16x256xf32, #tpu.memory_space<any>> -> memref<1x1x256xf32, #tpu.memory_space<any>>
    %94 = tpu.memref_squeeze %93 : memref<1x1x256xf32, #tpu.memory_space<any>> -> memref<1x256xf32, #tpu.memory_space<any>>
    %c11_i32_61 = arith.constant 11 : i32
    %c0_i32_62 = arith.constant 0 : i32
    %95 = tpu.memref_slice %arg3[%c0_i32_58, %c11_i32_61, %c0_i32_62] : memref<1x16x256xf32, #tpu.memory_space<vmem>> -> memref<1x1x256xf32, #tpu.memory_space<vmem>>
    %96 = tpu.memref_squeeze %95 : memref<1x1x256xf32, #tpu.memory_space<vmem>> -> memref<1x256xf32, #tpu.memory_space<vmem>>
    %97 = tpu.memref_slice %arg4[%c11_i32] : memref<16x!tpu.dma_semaphore, #tpu.memory_space<semaphore_mem>> -> memref<1x!tpu.dma_semaphore, #tpu.memory_space<semaphore_mem>>
    %98 = tpu.memref_squeeze %97 : memref<1x!tpu.dma_semaphore, #tpu.memory_space<semaphore_mem>> -> memref<!tpu.dma_semaphore, #tpu.memory_space<semaphore_mem>>
    tpu.enqueue_dma source(%94 : memref<1x256xf32, #tpu.memory_space<any>>) target(%96 : memref<1x256xf32, #tpu.memory_space<vmem>>) target_semaphore(%98 : memref<!tpu.dma_semaphore, #tpu.memory_space<semaphore_mem>>)
    %99 = arith.index_cast %2 : i32 to index
    %c12 = arith.constant 12 : index
    %100 = memref.load %arg1[%99, %c12] : memref<4x16xi32, #tpu.memory_space<smem>>
    %c0_i32_63 = arith.constant 0 : i32
    %c12_i32 = arith.constant 12 : i32
    %c12_i32_64 = arith.constant 12 : i32
    %c0_i32_65 = arith.constant 0 : i32
    %101 = tpu.memref_slice %arg2[%100, %c12_i32_64, %c0_i32_65] : memref<16x16x256xf32, #tpu.memory_space<any>> -> memref<1x1x256xf32, #tpu.memory_space<any>>
    %102 = tpu.memref_squeeze %101 : memref<1x1x256xf32, #tpu.memory_space<any>> -> memref<1x256xf32, #tpu.memory_space<any>>
    %c12_i32_66 = arith.constant 12 : i32
    %c0_i32_67 = arith.constant 0 : i32
    %103 = tpu.memref_slice %arg3[%c0_i32_63, %c12_i32_66, %c0_i32_67] : memref<1x16x256xf32, #tpu.memory_space<vmem>> -> memref<1x1x256xf32, #tpu.memory_space<vmem>>
    %104 = tpu.memref_squeeze %103 : memref<1x1x256xf32, #tpu.memory_space<vmem>> -> memref<1x256xf32, #tpu.memory_space<vmem>>
    %105 = tpu.memref_slice %arg4[%c12_i32] : memref<16x!tpu.dma_semaphore, #tpu.memory_space<semaphore_mem>> -> memref<1x!tpu.dma_semaphore, #tpu.memory_space<semaphore_mem>>
    %106 = tpu.memref_squeeze %105 : memref<1x!tpu.dma_semaphore, #tpu.memory_space<semaphore_mem>> -> memref<!tpu.dma_semaphore, #tpu.memory_space<semaphore_mem>>
    tpu.enqueue_dma source(%102 : memref<1x256xf32, #tpu.memory_space<any>>) target(%104 : memref<1x256xf32, #tpu.memory_space<vmem>>) target_semaphore(%106 : memref<!tpu.dma_semaphore, #tpu.memory_space<semaphore_mem>>)
    %107 = arith.index_cast %2 : i32 to index
    %c13 = arith.constant 13 : index
    %108 = memref.load %arg1[%107, %c13] : memref<4x16xi32, #tpu.memory_space<smem>>
    %c0_i32_68 = arith.constant 0 : i32
    %c13_i32 = arith.constant 13 : i32
    %c13_i32_69 = arith.constant 13 : i32
    %c0_i32_70 = arith.constant 0 : i32
    %109 = tpu.memref_slice %arg2[%108, %c13_i32_69, %c0_i32_70] : memref<16x16x256xf32, #tpu.memory_space<any>> -> memref<1x1x256xf32, #tpu.memory_space<any>>
    %110 = tpu.memref_squeeze %109 : memref<1x1x256xf32, #tpu.memory_space<any>> -> memref<1x256xf32, #tpu.memory_space<any>>
    %c13_i32_71 = arith.constant 13 : i32
    %c0_i32_72 = arith.constant 0 : i32
    %111 = tpu.memref_slice %arg3[%c0_i32_68, %c13_i32_71, %c0_i32_72] : memref<1x16x256xf32, #tpu.memory_space<vmem>> -> memref<1x1x256xf32, #tpu.memory_space<vmem>>
    %112 = tpu.memref_squeeze %111 : memref<1x1x256xf32, #tpu.memory_space<vmem>> -> memref<1x256xf32, #tpu.memory_space<vmem>>
    %113 = tpu.memref_slice %arg4[%c13_i32] : memref<16x!tpu.dma_semaphore, #tpu.memory_space<semaphore_mem>> -> memref<1x!tpu.dma_semaphore, #tpu.memory_space<semaphore_mem>>
    %114 = tpu.memref_squeeze %113 : memref<1x!tpu.dma_semaphore, #tpu.memory_space<semaphore_mem>> -> memref<!tpu.dma_semaphore, #tpu.memory_space<semaphore_mem>>
    tpu.enqueue_dma source(%110 : memref<1x256xf32, #tpu.memory_space<any>>) target(%112 : memref<1x256xf32, #tpu.memory_space<vmem>>) target_semaphore(%114 : memref<!tpu.dma_semaphore, #tpu.memory_space<semaphore_mem>>)
    %115 = arith.index_cast %2 : i32 to index
    %c14 = arith.constant 14 : index
    %116 = memref.load %arg1[%115, %c14] : memref<4x16xi32, #tpu.memory_space<smem>>
    %c0_i32_73 = arith.constant 0 : i32
    %c14_i32 = arith.constant 14 : i32
    %c14_i32_74 = arith.constant 14 : i32
    %c0_i32_75 = arith.constant 0 : i32
    %117 = tpu.memref_slice %arg2[%116, %c14_i32_74, %c0_i32_75] : memref<16x16x256xf32, #tpu.memory_space<any>> -> memref<1x1x256xf32, #tpu.memory_space<any>>
    %118 = tpu.memref_squeeze %117 : memref<1x1x256xf32, #tpu.memory_space<any>> -> memref<1x256xf32, #tpu.memory_space<any>>
    %c14_i32_76 = arith.constant 14 : i32
    %c0_i32_77 = arith.constant 0 : i32
    %119 = tpu.memref_slice %arg3[%c0_i32_73, %c14_i32_76, %c0_i32_77] : memref<1x16x256xf32, #tpu.memory_space<vmem>> -> memref<1x1x256xf32, #tpu.memory_space<vmem>>
    %120 = tpu.memref_squeeze %119 : memref<1x1x256xf32, #tpu.memory_space<vmem>> -> memref<1x256xf32, #tpu.memory_space<vmem>>
    %121 = tpu.memref_slice %arg4[%c14_i32] : memref<16x!tpu.dma_semaphore, #tpu.memory_space<semaphore_mem>> -> memref<1x!tpu.dma_semaphore, #tpu.memory_space<semaphore_mem>>
    %122 = tpu.memref_squeeze %121 : memref<1x!tpu.dma_semaphore, #tpu.memory_space<semaphore_mem>> -> memref<!tpu.dma_semaphore, #tpu.memory_space<semaphore_mem>>
    tpu.enqueue_dma source(%118 : memref<1x256xf32, #tpu.memory_space<any>>) target(%120 : memref<1x256xf32, #tpu.memory_space<vmem>>) target_semaphore(%122 : memref<!tpu.dma_semaphore, #tpu.memory_space<semaphore_mem>>)
    %123 = arith.index_cast %2 : i32 to index
    %c15 = arith.constant 15 : index
    %124 = memref.load %arg1[%123, %c15] : memref<4x16xi32, #tpu.memory_space<smem>>
    %c0_i32_78 = arith.constant 0 : i32
    %c15_i32 = arith.constant 15 : i32
    %c15_i32_79 = arith.constant 15 : i32
    %c0_i32_80 = arith.constant 0 : i32
    %125 = tpu.memref_slice %arg2[%124, %c15_i32_79, %c0_i32_80] : memref<16x16x256xf32, #tpu.memory_space<any>> -> memref<1x1x256xf32, #tpu.memory_space<any>>
    %126 = tpu.memref_squeeze %125 : memref<1x1x256xf32, #tpu.memory_space<any>> -> memref<1x256xf32, #tpu.memory_space<any>>
    %c15_i32_81 = arith.constant 15 : i32
    %c0_i32_82 = arith.constant 0 : i32
    %127 = tpu.memref_slice %arg3[%c0_i32_78, %c15_i32_81, %c0_i32_82] : memref<1x16x256xf32, #tpu.memory_space<vmem>> -> memref<1x1x256xf32, #tpu.memory_space<vmem>>
    %128 = tpu.memref_squeeze %127 : memref<1x1x256xf32, #tpu.memory_space<vmem>> -> memref<1x256xf32, #tpu.memory_space<vmem>>
    %129 = tpu.memref_slice %arg4[%c15_i32] : memref<16x!tpu.dma_semaphore, #tpu.memory_space<semaphore_mem>> -> memref<1x!tpu.dma_semaphore, #tpu.memory_space<semaphore_mem>>
    %130 = tpu.memref_squeeze %129 : memref<1x!tpu.dma_semaphore, #tpu.memory_space<semaphore_mem>> -> memref<!tpu.dma_semaphore, #tpu.memory_space<semaphore_mem>>
    tpu.enqueue_dma source(%126 : memref<1x256xf32, #tpu.memory_space<any>>) target(%128 : memref<1x256xf32, #tpu.memory_space<vmem>>) target_semaphore(%130 : memref<!tpu.dma_semaphore, #tpu.memory_space<semaphore_mem>>)
    %c0_i32_83 = arith.constant 0 : i32
    %c0_i32_84 = arith.constant 0 : i32
    %c0_i32_85 = arith.constant 0 : i32
    %c0_i32_86 = arith.constant 0 : i32
    %131 = tpu.memref_slice %arg2[%4, %c0_i32_85, %c0_i32_86] : memref<16x16x256xf32, #tpu.memory_space<any>> -> memref<1x1x256xf32, #tpu.memory_space<any>>
    %132 = tpu.memref_squeeze %131 : memref<1x1x256xf32, #tpu.memory_space<any>> -> memref<1x256xf32, #tpu.memory_space<any>>
    %c0_i32_87 = arith.constant 0 : i32
    %c0_i32_88 = arith.constant 0 : i32
    %133 = tpu.memref_slice %arg3[%c0_i32_83, %c0_i32_87, %c0_i32_88] : memref<1x16x256xf32, #tpu.memory_space<vmem>> -> memref<1x1x256xf32, #tpu.memory_space<vmem>>
    %134 = tpu.memref_squeeze %133 : memref<1x1x256xf32, #tpu.memory_space<vmem>> -> memref<1x256xf32, #tpu.memory_space<vmem>>
    %135 = tpu.memref_slice %arg4[%c0_i32_84] : memref<16x!tpu.dma_semaphore, #tpu.memory_space<semaphore_mem>> -> memref<1x!tpu.dma_semaphore, #tpu.memory_space<semaphore_mem>>
    %136 = tpu.memref_squeeze %135 : memref<1x!tpu.dma_semaphore, #tpu.memory_space<semaphore_mem>> -> memref<!tpu.dma_semaphore, #tpu.memory_space<semaphore_mem>>
    tpu.wait_dma2 semaphore(%136 : memref<!tpu.dma_semaphore, #tpu.memory_space<semaphore_mem>>) src(%132 : memref<1x256xf32, #tpu.memory_space<any>>) dst(%134 : memref<1x256xf32, #tpu.memory_space<vmem>>)
    %c0_i32_89 = arith.constant 0 : i32
    %c1_i32_90 = arith.constant 1 : i32
    %c1_i32_91 = arith.constant 1 : i32
    %c0_i32_92 = arith.constant 0 : i32
    %137 = tpu.memref_slice %arg2[%12, %c1_i32_91, %c0_i32_92] : memref<16x16x256xf32, #tpu.memory_space<any>> -> memref<1x1x256xf32, #tpu.memory_space<any>>
    %138 = tpu.memref_squeeze %137 : memref<1x1x256xf32, #tpu.memory_space<any>> -> memref<1x256xf32, #tpu.memory_space<any>>
    %c1_i32_93 = arith.constant 1 : i32
    %c0_i32_94 = arith.constant 0 : i32
    %139 = tpu.memref_slice %arg3[%c0_i32_89, %c1_i32_93, %c0_i32_94] : memref<1x16x256xf32, #tpu.memory_space<vmem>> -> memref<1x1x256xf32, #tpu.memory_space<vmem>>
    %140 = tpu.memref_squeeze %139 : memref<1x1x256xf32, #tpu.memory_space<vmem>> -> memref<1x256xf32, #tpu.memory_space<vmem>>
    %141 = tpu.memref_slice %arg4[%c1_i32_90] : memref<16x!tpu.dma_semaphore, #tpu.memory_space<semaphore_mem>> -> memref<1x!tpu.dma_semaphore, #tpu.memory_space<semaphore_mem>>
    %142 = tpu.memref_squeeze %141 : memref<1x!tpu.dma_semaphore, #tpu.memory_space<semaphore_mem>> -> memref<!tpu.dma_semaphore, #tpu.memory_space<semaphore_mem>>
    tpu.wait_dma2 semaphore(%142 : memref<!tpu.dma_semaphore, #tpu.memory_space<semaphore_mem>>) src(%138 : memref<1x256xf32, #tpu.memory_space<any>>) dst(%140 : memref<1x256xf32, #tpu.memory_space<vmem>>)
    %c0_i32_95 = arith.constant 0 : i32
    %c2_i32_96 = arith.constant 2 : i32
    %c2_i32_97 = arith.constant 2 : i32
    %c0_i32_98 = arith.constant 0 : i32
    %143 = tpu.memref_slice %arg2[%20, %c2_i32_97, %c0_i32_98] : memref<16x16x256xf32, #tpu.memory_space<any>> -> memref<1x1x256xf32, #tpu.memory_space<any>>
    %144 = tpu.memref_squeeze %143 : memref<1x1x256xf32, #tpu.memory_space<any>> -> memref<1x256xf32, #tpu.memory_space<any>>
    %c2_i32_99 = arith.constant 2 : i32
    %c0_i32_100 = arith.constant 0 : i32
    %145 = tpu.memref_slice %arg3[%c0_i32_95, %c2_i32_99, %c0_i32_100] : memref<1x16x256xf32, #tpu.memory_space<vmem>> -> memref<1x1x256xf32, #tpu.memory_space<vmem>>
    %146 = tpu.memref_squeeze %145 : memref<1x1x256xf32, #tpu.memory_space<vmem>> -> memref<1x256xf32, #tpu.memory_space<vmem>>
    %147 = tpu.memref_slice %arg4[%c2_i32_96] : memref<16x!tpu.dma_semaphore, #tpu.memory_space<semaphore_mem>> -> memref<1x!tpu.dma_semaphore, #tpu.memory_space<semaphore_mem>>
    %148 = tpu.memref_squeeze %147 : memref<1x!tpu.dma_semaphore, #tpu.memory_space<semaphore_mem>> -> memref<!tpu.dma_semaphore, #tpu.memory_space<semaphore_mem>>
    tpu.wait_dma2 semaphore(%148 : memref<!tpu.dma_semaphore, #tpu.memory_space<semaphore_mem>>) src(%144 : memref<1x256xf32, #tpu.memory_space<any>>) dst(%146 : memref<1x256xf32, #tpu.memory_space<vmem>>)
    %c0_i32_101 = arith.constant 0 : i32
    %c3_i32_102 = arith.constant 3 : i32
    %c3_i32_103 = arith.constant 3 : i32
    %c0_i32_104 = arith.constant 0 : i32
    %149 = tpu.memref_slice %arg2[%28, %c3_i32_103, %c0_i32_104] : memref<16x16x256xf32, #tpu.memory_space<any>> -> memref<1x1x256xf32, #tpu.memory_space<any>>
    %150 = tpu.memref_squeeze %149 : memref<1x1x256xf32, #tpu.memory_space<any>> -> memref<1x256xf32, #tpu.memory_space<any>>
    %c3_i32_105 = arith.constant 3 : i32
    %c0_i32_106 = arith.constant 0 : i32
    %151 = tpu.memref_slice %arg3[%c0_i32_101, %c3_i32_105, %c0_i32_106] : memref<1x16x256xf32, #tpu.memory_space<vmem>> -> memref<1x1x256xf32, #tpu.memory_space<vmem>>
    %152 = tpu.memref_squeeze %151 : memref<1x1x256xf32, #tpu.memory_space<vmem>> -> memref<1x256xf32, #tpu.memory_space<vmem>>
    %153 = tpu.memref_slice %arg4[%c3_i32_102] : memref<16x!tpu.dma_semaphore, #tpu.memory_space<semaphore_mem>> -> memref<1x!tpu.dma_semaphore, #tpu.memory_space<semaphore_mem>>
    %154 = tpu.memref_squeeze %153 : memref<1x!tpu.dma_semaphore, #tpu.memory_space<semaphore_mem>> -> memref<!tpu.dma_semaphore, #tpu.memory_space<semaphore_mem>>
    tpu.wait_dma2 semaphore(%154 : memref<!tpu.dma_semaphore, #tpu.memory_space<semaphore_mem>>) src(%150 : memref<1x256xf32, #tpu.memory_space<any>>) dst(%152 : memref<1x256xf32, #tpu.memory_space<vmem>>)
    %c0_i32_107 = arith.constant 0 : i32
    %c4_i32_108 = arith.constant 4 : i32
    %c4_i32_109 = arith.constant 4 : i32
    %c0_i32_110 = arith.constant 0 : i32
    %155 = tpu.memref_slice %arg2[%36, %c4_i32_109, %c0_i32_110] : memref<16x16x256xf32, #tpu.memory_space<any>> -> memref<1x1x256xf32, #tpu.memory_space<any>>
    %156 = tpu.memref_squeeze %155 : memref<1x1x256xf32, #tpu.memory_space<any>> -> memref<1x256xf32, #tpu.memory_space<any>>
    %c4_i32_111 = arith.constant 4 : i32
    %c0_i32_112 = arith.constant 0 : i32
    %157 = tpu.memref_slice %arg3[%c0_i32_107, %c4_i32_111, %c0_i32_112] : memref<1x16x256xf32, #tpu.memory_space<vmem>> -> memref<1x1x256xf32, #tpu.memory_space<vmem>>
    %158 = tpu.memref_squeeze %157 : memref<1x1x256xf32, #tpu.memory_space<vmem>> -> memref<1x256xf32, #tpu.memory_space<vmem>>
    %159 = tpu.memref_slice %arg4[%c4_i32_108] : memref<16x!tpu.dma_semaphore, #tpu.memory_space<semaphore_mem>> -> memref<1x!tpu.dma_semaphore, #tpu.memory_space<semaphore_mem>>
    %160 = tpu.memref_squeeze %159 : memref<1x!tpu.dma_semaphore, #tpu.memory_space<semaphore_mem>> -> memref<!tpu.dma_semaphore, #tpu.memory_space<semaphore_mem>>
    tpu.wait_dma2 semaphore(%160 : memref<!tpu.dma_semaphore, #tpu.memory_space<semaphore_mem>>) src(%156 : memref<1x256xf32, #tpu.memory_space<any>>) dst(%158 : memref<1x256xf32, #tpu.memory_space<vmem>>)
    %c0_i32_113 = arith.constant 0 : i32
    %c5_i32_114 = arith.constant 5 : i32
    %c5_i32_115 = arith.constant 5 : i32
    %c0_i32_116 = arith.constant 0 : i32
    %161 = tpu.memref_slice %arg2[%44, %c5_i32_115, %c0_i32_116] : memref<16x16x256xf32, #tpu.memory_space<any>> -> memref<1x1x256xf32, #tpu.memory_space<any>>
    %162 = tpu.memref_squeeze %161 : memref<1x1x256xf32, #tpu.memory_space<any>> -> memref<1x256xf32, #tpu.memory_space<any>>
    %c5_i32_117 = arith.constant 5 : i32
    %c0_i32_118 = arith.constant 0 : i32
    %163 = tpu.memref_slice %arg3[%c0_i32_113, %c5_i32_117, %c0_i32_118] : memref<1x16x256xf32, #tpu.memory_space<vmem>> -> memref<1x1x256xf32, #tpu.memory_space<vmem>>
    %164 = tpu.memref_squeeze %163 : memref<1x1x256xf32, #tpu.memory_space<vmem>> -> memref<1x256xf32, #tpu.memory_space<vmem>>
    %165 = tpu.memref_slice %arg4[%c5_i32_114] : memref<16x!tpu.dma_semaphore, #tpu.memory_space<semaphore_mem>> -> memref<1x!tpu.dma_semaphore, #tpu.memory_space<semaphore_mem>>
    %166 = tpu.memref_squeeze %165 : memref<1x!tpu.dma_semaphore, #tpu.memory_space<semaphore_mem>> -> memref<!tpu.dma_semaphore, #tpu.memory_space<semaphore_mem>>
    tpu.wait_dma2 semaphore(%166 : memref<!tpu.dma_semaphore, #tpu.memory_space<semaphore_mem>>) src(%162 : memref<1x256xf32, #tpu.memory_space<any>>) dst(%164 : memref<1x256xf32, #tpu.memory_space<vmem>>)
    %c0_i32_119 = arith.constant 0 : i32
    %c6_i32_120 = arith.constant 6 : i32
    %c6_i32_121 = arith.constant 6 : i32
    %c0_i32_122 = arith.constant 0 : i32
    %167 = tpu.memref_slice %arg2[%52, %c6_i32_121, %c0_i32_122] : memref<16x16x256xf32, #tpu.memory_space<any>> -> memref<1x1x256xf32, #tpu.memory_space<any>>
    %168 = tpu.memref_squeeze %167 : memref<1x1x256xf32, #tpu.memory_space<any>> -> memref<1x256xf32, #tpu.memory_space<any>>
    %c6_i32_123 = arith.constant 6 : i32
    %c0_i32_124 = arith.constant 0 : i32
    %169 = tpu.memref_slice %arg3[%c0_i32_119, %c6_i32_123, %c0_i32_124] : memref<1x16x256xf32, #tpu.memory_space<vmem>> -> memref<1x1x256xf32, #tpu.memory_space<vmem>>
    %170 = tpu.memref_squeeze %169 : memref<1x1x256xf32, #tpu.memory_space<vmem>> -> memref<1x256xf32, #tpu.memory_space<vmem>>
    %171 = tpu.memref_slice %arg4[%c6_i32_120] : memref<16x!tpu.dma_semaphore, #tpu.memory_space<semaphore_mem>> -> memref<1x!tpu.dma_semaphore, #tpu.memory_space<semaphore_mem>>
    %172 = tpu.memref_squeeze %171 : memref<1x!tpu.dma_semaphore, #tpu.memory_space<semaphore_mem>> -> memref<!tpu.dma_semaphore, #tpu.memory_space<semaphore_mem>>
    tpu.wait_dma2 semaphore(%172 : memref<!tpu.dma_semaphore, #tpu.memory_space<semaphore_mem>>) src(%168 : memref<1x256xf32, #tpu.memory_space<any>>) dst(%170 : memref<1x256xf32, #tpu.memory_space<vmem>>)
    %c0_i32_125 = arith.constant 0 : i32
    %c7_i32_126 = arith.constant 7 : i32
    %c7_i32_127 = arith.constant 7 : i32
    %c0_i32_128 = arith.constant 0 : i32
    %173 = tpu.memref_slice %arg2[%60, %c7_i32_127, %c0_i32_128] : memref<16x16x256xf32, #tpu.memory_space<any>> -> memref<1x1x256xf32, #tpu.memory_space<any>>
    %174 = tpu.memref_squeeze %173 : memref<1x1x256xf32, #tpu.memory_space<any>> -> memref<1x256xf32, #tpu.memory_space<any>>
    %c7_i32_129 = arith.constant 7 : i32
    %c0_i32_130 = arith.constant 0 : i32
    %175 = tpu.memref_slice %arg3[%c0_i32_125, %c7_i32_129, %c0_i32_130] : memref<1x16x256xf32, #tpu.memory_space<vmem>> -> memref<1x1x256xf32, #tpu.memory_space<vmem>>
    %176 = tpu.memref_squeeze %175 : memref<1x1x256xf32, #tpu.memory_space<vmem>> -> memref<1x256xf32, #tpu.memory_space<vmem>>
    %177 = tpu.memref_slice %arg4[%c7_i32_126] : memref<16x!tpu.dma_semaphore, #tpu.memory_space<semaphore_mem>> -> memref<1x!tpu.dma_semaphore, #tpu.memory_space<semaphore_mem>>
    %178 = tpu.memref_squeeze %177 : memref<1x!tpu.dma_semaphore, #tpu.memory_space<semaphore_mem>> -> memref<!tpu.dma_semaphore, #tpu.memory_space<semaphore_mem>>
    tpu.wait_dma2 semaphore(%178 : memref<!tpu.dma_semaphore, #tpu.memory_space<semaphore_mem>>) src(%174 : memref<1x256xf32, #tpu.memory_space<any>>) dst(%176 : memref<1x256xf32, #tpu.memory_space<vmem>>)
    %c0_i32_131 = arith.constant 0 : i32
    %c8_i32_132 = arith.constant 8 : i32
    %c8_i32_133 = arith.constant 8 : i32
    %c0_i32_134 = arith.constant 0 : i32
    %179 = tpu.memref_slice %arg2[%68, %c8_i32_133, %c0_i32_134] : memref<16x16x256xf32, #tpu.memory_space<any>> -> memref<1x1x256xf32, #tpu.memory_space<any>>
    %180 = tpu.memref_squeeze %179 : memref<1x1x256xf32, #tpu.memory_space<any>> -> memref<1x256xf32, #tpu.memory_space<any>>
    %c8_i32_135 = arith.constant 8 : i32
    %c0_i32_136 = arith.constant 0 : i32
    %181 = tpu.memref_slice %arg3[%c0_i32_131, %c8_i32_135, %c0_i32_136] : memref<1x16x256xf32, #tpu.memory_space<vmem>> -> memref<1x1x256xf32, #tpu.memory_space<vmem>>
    %182 = tpu.memref_squeeze %181 : memref<1x1x256xf32, #tpu.memory_space<vmem>> -> memref<1x256xf32, #tpu.memory_space<vmem>>
    %183 = tpu.memref_slice %arg4[%c8_i32_132] : memref<16x!tpu.dma_semaphore, #tpu.memory_space<semaphore_mem>> -> memref<1x!tpu.dma_semaphore, #tpu.memory_space<semaphore_mem>>
    %184 = tpu.memref_squeeze %183 : memref<1x!tpu.dma_semaphore, #tpu.memory_space<semaphore_mem>> -> memref<!tpu.dma_semaphore, #tpu.memory_space<semaphore_mem>>
    tpu.wait_dma2 semaphore(%184 : memref<!tpu.dma_semaphore, #tpu.memory_space<semaphore_mem>>) src(%180 : memref<1x256xf32, #tpu.memory_space<any>>) dst(%182 : memref<1x256xf32, #tpu.memory_space<vmem>>)
    %c0_i32_137 = arith.constant 0 : i32
    %c9_i32_138 = arith.constant 9 : i32
    %c9_i32_139 = arith.constant 9 : i32
    %c0_i32_140 = arith.constant 0 : i32
    %185 = tpu.memref_slice %arg2[%76, %c9_i32_139, %c0_i32_140] : memref<16x16x256xf32, #tpu.memory_space<any>> -> memref<1x1x256xf32, #tpu.memory_space<any>>
    %186 = tpu.memref_squeeze %185 : memref<1x1x256xf32, #tpu.memory_space<any>> -> memref<1x256xf32, #tpu.memory_space<any>>
    %c9_i32_141 = arith.constant 9 : i32
    %c0_i32_142 = arith.constant 0 : i32
    %187 = tpu.memref_slice %arg3[%c0_i32_137, %c9_i32_141, %c0_i32_142] : memref<1x16x256xf32, #tpu.memory_space<vmem>> -> memref<1x1x256xf32, #tpu.memory_space<vmem>>
    %188 = tpu.memref_squeeze %187 : memref<1x1x256xf32, #tpu.memory_space<vmem>> -> memref<1x256xf32, #tpu.memory_space<vmem>>
    %189 = tpu.memref_slice %arg4[%c9_i32_138] : memref<16x!tpu.dma_semaphore, #tpu.memory_space<semaphore_mem>> -> memref<1x!tpu.dma_semaphore, #tpu.memory_space<semaphore_mem>>
    %190 = tpu.memref_squeeze %189 : memref<1x!tpu.dma_semaphore, #tpu.memory_space<semaphore_mem>> -> memref<!tpu.dma_semaphore, #tpu.memory_space<semaphore_mem>>
    tpu.wait_dma2 semaphore(%190 : memref<!tpu.dma_semaphore, #tpu.memory_space<semaphore_mem>>) src(%186 : memref<1x256xf32, #tpu.memory_space<any>>) dst(%188 : memref<1x256xf32, #tpu.memory_space<vmem>>)
    %c0_i32_143 = arith.constant 0 : i32
    %c10_i32_144 = arith.constant 10 : i32
    %c10_i32_145 = arith.constant 10 : i32
    %c0_i32_146 = arith.constant 0 : i32
    %191 = tpu.memref_slice %arg2[%84, %c10_i32_145, %c0_i32_146] : memref<16x16x256xf32, #tpu.memory_space<any>> -> memref<1x1x256xf32, #tpu.memory_space<any>>
    %192 = tpu.memref_squeeze %191 : memref<1x1x256xf32, #tpu.memory_space<any>> -> memref<1x256xf32, #tpu.memory_space<any>>
    %c10_i32_147 = arith.constant 10 : i32
    %c0_i32_148 = arith.constant 0 : i32
    %193 = tpu.memref_slice %arg3[%c0_i32_143, %c10_i32_147, %c0_i32_148] : memref<1x16x256xf32, #tpu.memory_space<vmem>> -> memref<1x1x256xf32, #tpu.memory_space<vmem>>
    %194 = tpu.memref_squeeze %193 : memref<1x1x256xf32, #tpu.memory_space<vmem>> -> memref<1x256xf32, #tpu.memory_space<vmem>>
    %195 = tpu.memref_slice %arg4[%c10_i32_144] : memref<16x!tpu.dma_semaphore, #tpu.memory_space<semaphore_mem>> -> memref<1x!tpu.dma_semaphore, #tpu.memory_space<semaphore_mem>>
    %196 = tpu.memref_squeeze %195 : memref<1x!tpu.dma_semaphore, #tpu.memory_space<semaphore_mem>> -> memref<!tpu.dma_semaphore, #tpu.memory_space<semaphore_mem>>
    tpu.wait_dma2 semaphore(%196 : memref<!tpu.dma_semaphore, #tpu.memory_space<semaphore_mem>>) src(%192 : memref<1x256xf32, #tpu.memory_space<any>>) dst(%194 : memref<1x256xf32, #tpu.memory_space<vmem>>)
    %c0_i32_149 = arith.constant 0 : i32
    %c11_i32_150 = arith.constant 11 : i32
    %c11_i32_151 = arith.constant 11 : i32
    %c0_i32_152 = arith.constant 0 : i32
    %197 = tpu.memref_slice %arg2[%92, %c11_i32_151, %c0_i32_152] : memref<16x16x256xf32, #tpu.memory_space<any>> -> memref<1x1x256xf32, #tpu.memory_space<any>>
    %198 = tpu.memref_squeeze %197 : memref<1x1x256xf32, #tpu.memory_space<any>> -> memref<1x256xf32, #tpu.memory_space<any>>
    %c11_i32_153 = arith.constant 11 : i32
    %c0_i32_154 = arith.constant 0 : i32
    %199 = tpu.memref_slice %arg3[%c0_i32_149, %c11_i32_153, %c0_i32_154] : memref<1x16x256xf32, #tpu.memory_space<vmem>> -> memref<1x1x256xf32, #tpu.memory_space<vmem>>
    %200 = tpu.memref_squeeze %199 : memref<1x1x256xf32, #tpu.memory_space<vmem>> -> memref<1x256xf32, #tpu.memory_space<vmem>>
    %201 = tpu.memref_slice %arg4[%c11_i32_150] : memref<16x!tpu.dma_semaphore, #tpu.memory_space<semaphore_mem>> -> memref<1x!tpu.dma_semaphore, #tpu.memory_space<semaphore_mem>>
    %202 = tpu.memref_squeeze %201 : memref<1x!tpu.dma_semaphore, #tpu.memory_space<semaphore_mem>> -> memref<!tpu.dma_semaphore, #tpu.memory_space<semaphore_mem>>
    tpu.wait_dma2 semaphore(%202 : memref<!tpu.dma_semaphore, #tpu.memory_space<semaphore_mem>>) src(%198 : memref<1x256xf32, #tpu.memory_space<any>>) dst(%200 : memref<1x256xf32, #tpu.memory_space<vmem>>)
    %c0_i32_155 = arith.constant 0 : i32
    %c12_i32_156 = arith.constant 12 : i32
    %c12_i32_157 = arith.constant 12 : i32
    %c0_i32_158 = arith.constant 0 : i32
    %203 = tpu.memref_slice %arg2[%100, %c12_i32_157, %c0_i32_158] : memref<16x16x256xf32, #tpu.memory_space<any>> -> memref<1x1x256xf32, #tpu.memory_space<any>>
    %204 = tpu.memref_squeeze %203 : memref<1x1x256xf32, #tpu.memory_space<any>> -> memref<1x256xf32, #tpu.memory_space<any>>
    %c12_i32_159 = arith.constant 12 : i32
    %c0_i32_160 = arith.constant 0 : i32
    %205 = tpu.memref_slice %arg3[%c0_i32_155, %c12_i32_159, %c0_i32_160] : memref<1x16x256xf32, #tpu.memory_space<vmem>> -> memref<1x1x256xf32, #tpu.memory_space<vmem>>
    %206 = tpu.memref_squeeze %205 : memref<1x1x256xf32, #tpu.memory_space<vmem>> -> memref<1x256xf32, #tpu.memory_space<vmem>>
    %207 = tpu.memref_slice %arg4[%c12_i32_156] : memref<16x!tpu.dma_semaphore, #tpu.memory_space<semaphore_mem>> -> memref<1x!tpu.dma_semaphore, #tpu.memory_space<semaphore_mem>>
    %208 = tpu.memref_squeeze %207 : memref<1x!tpu.dma_semaphore, #tpu.memory_space<semaphore_mem>> -> memref<!tpu.dma_semaphore, #tpu.memory_space<semaphore_mem>>
    tpu.wait_dma2 semaphore(%208 : memref<!tpu.dma_semaphore, #tpu.memory_space<semaphore_mem>>) src(%204 : memref<1x256xf32, #tpu.memory_space<any>>) dst(%206 : memref<1x256xf32, #tpu.memory_space<vmem>>)
    %c0_i32_161 = arith.constant 0 : i32
    %c13_i32_162 = arith.constant 13 : i32
    %c13_i32_163 = arith.constant 13 : i32
    %c0_i32_164 = arith.constant 0 : i32
    %209 = tpu.memref_slice %arg2[%108, %c13_i32_163, %c0_i32_164] : memref<16x16x256xf32, #tpu.memory_space<any>> -> memref<1x1x256xf32, #tpu.memory_space<any>>
    %210 = tpu.memref_squeeze %209 : memref<1x1x256xf32, #tpu.memory_space<any>> -> memref<1x256xf32, #tpu.memory_space<any>>
    %c13_i32_165 = arith.constant 13 : i32
    %c0_i32_166 = arith.constant 0 : i32
    %211 = tpu.memref_slice %arg3[%c0_i32_161, %c13_i32_165, %c0_i32_166] : memref<1x16x256xf32, #tpu.memory_space<vmem>> -> memref<1x1x256xf32, #tpu.memory_space<vmem>>
    %212 = tpu.memref_squeeze %211 : memref<1x1x256xf32, #tpu.memory_space<vmem>> -> memref<1x256xf32, #tpu.memory_space<vmem>>
    %213 = tpu.memref_slice %arg4[%c13_i32_162] : memref<16x!tpu.dma_semaphore, #tpu.memory_space<semaphore_mem>> -> memref<1x!tpu.dma_semaphore, #tpu.memory_space<semaphore_mem>>
    %214 = tpu.memref_squeeze %213 : memref<1x!tpu.dma_semaphore, #tpu.memory_space<semaphore_mem>> -> memref<!tpu.dma_semaphore, #tpu.memory_space<semaphore_mem>>
    tpu.wait_dma2 semaphore(%214 : memref<!tpu.dma_semaphore, #tpu.memory_space<semaphore_mem>>) src(%210 : memref<1x256xf32, #tpu.memory_space<any>>) dst(%212 : memref<1x256xf32, #tpu.memory_space<vmem>>)
    %c0_i32_167 = arith.constant 0 : i32
    %c14_i32_168 = arith.constant 14 : i32
    %c14_i32_169 = arith.constant 14 : i32
    %c0_i32_170 = arith.constant 0 : i32
    %215 = tpu.memref_slice %arg2[%116, %c14_i32_169, %c0_i32_170] : memref<16x16x256xf32, #tpu.memory_space<any>> -> memref<1x1x256xf32, #tpu.memory_space<any>>
    %216 = tpu.memref_squeeze %215 : memref<1x1x256xf32, #tpu.memory_space<any>> -> memref<1x256xf32, #tpu.memory_space<any>>
    %c14_i32_171 = arith.constant 14 : i32
    %c0_i32_172 = arith.constant 0 : i32
    %217 = tpu.memref_slice %arg3[%c0_i32_167, %c14_i32_171, %c0_i32_172] : memref<1x16x256xf32, #tpu.memory_space<vmem>> -> memref<1x1x256xf32, #tpu.memory_space<vmem>>
    %218 = tpu.memref_squeeze %217 : memref<1x1x256xf32, #tpu.memory_space<vmem>> -> memref<1x256xf32, #tpu.memory_space<vmem>>
    %219 = tpu.memref_slice %arg4[%c14_i32_168] : memref<16x!tpu.dma_semaphore, #tpu.memory_space<semaphore_mem>> -> memref<1x!tpu.dma_semaphore, #tpu.memory_space<semaphore_mem>>
    %220 = tpu.memref_squeeze %219 : memref<1x!tpu.dma_semaphore, #tpu.memory_space<semaphore_mem>> -> memref<!tpu.dma_semaphore, #tpu.memory_space<semaphore_mem>>
    tpu.wait_dma2 semaphore(%220 : memref<!tpu.dma_semaphore, #tpu.memory_space<semaphore_mem>>) src(%216 : memref<1x256xf32, #tpu.memory_space<any>>) dst(%218 : memref<1x256xf32, #tpu.memory_space<vmem>>)
    %c0_i32_173 = arith.constant 0 : i32
    %c15_i32_174 = arith.constant 15 : i32
    %c15_i32_175 = arith.constant 15 : i32
    %c0_i32_176 = arith.constant 0 : i32
    %221 = tpu.memref_slice %arg2[%124, %c15_i32_175, %c0_i32_176] : memref<16x16x256xf32, #tpu.memory_space<any>> -> memref<1x1x256xf32, #tpu.memory_space<any>>
    %222 = tpu.memref_squeeze %221 : memref<1x1x256xf32, #tpu.memory_space<any>> -> memref<1x256xf32, #tpu.memory_space<any>>
    %c15_i32_177 = arith.constant 15 : i32
    %c0_i32_178 = arith.constant 0 : i32
    %223 = tpu.memref_slice %arg3[%c0_i32_173, %c15_i32_177, %c0_i32_178] : memref<1x16x256xf32, #tpu.memory_space<vmem>> -> memref<1x1x256xf32, #tpu.memory_space<vmem>>
    %224 = tpu.memref_squeeze %223 : memref<1x1x256xf32, #tpu.memory_space<vmem>> -> memref<1x256xf32, #tpu.memory_space<vmem>>
    %225 = tpu.memref_slice %arg4[%c15_i32_174] : memref<16x!tpu.dma_semaphore, #tpu.memory_space<semaphore_mem>> -> memref<1x!tpu.dma_semaphore, #tpu.memory_space<semaphore_mem>>
    %226 = tpu.memref_squeeze %225 : memref<1x!tpu.dma_semaphore, #tpu.memory_space<semaphore_mem>> -> memref<!tpu.dma_semaphore, #tpu.memory_space<semaphore_mem>>
    tpu.wait_dma2 semaphore(%226 : memref<!tpu.dma_semaphore, #tpu.memory_space<semaphore_mem>>) src(%222 : memref<1x256xf32, #tpu.memory_space<any>>) dst(%224 : memref<1x256xf32, #tpu.memory_space<vmem>>)
    return
  }
  func.func @transform_1(%arg0: i32, %arg1: memref<4x16xi32, #tpu.memory_space<smem>>) -> (i32, i32, i32) {
    %c0_i32 = arith.constant 0 : i32
    %c0_i32_0 = arith.constant 0 : i32
    %c0_i32_1 = arith.constant 0 : i32
    return %arg0, %c0_i32, %c0_i32_0 : i32, i32, i32
  }
}

</mosaic_0001>

<llo_original>
// kernel: tpu_custom_call.1
$region0: #{tpu_custom_call.1}
  #allocation0 [shape = 'u32[]', space=smem, size = 0x4, offset = 0x4, fixed_abs, tag = 'smem constant byte address 0x4 - core index']
  #allocation1 [shape = 'u32[72,128]{1,0:T(1,128)}', space=vmem, size = 0x9000, scoped, tag = 'internal scratch']
  #allocation2 [shape = 's32[16]{0}', space=sflag, size = 0x40, scoped, tag = 'scratch operand']
  #allocation3 [shape = 's32[1]{0}', space=sflag, size = 0x4, scoped, tag = 'scoped memory for tpu_custom_call.1']
  #allocation4 [shape = 'u8[2048]{0}', space=smem, size = 0x800, scoped, tag = 'prefetched SMEM operand 0']
  #allocation7 [shape = 's32[]', space=sflag, size = 0x4, offset = 0, fixed_abs, tag = 'sflag constant byte address 0x0 - dummy sync flag']
  #allocation8 [shape = 's32[]', space=sflag, size = 0x4, offset = 0, fixed_abs, tag = 'sflag constant byte address 0x0 - dummy sync flag']
  #allocation9 [shape = 's32[]', space=sflag, size = 0x4, offset = 0, fixed_abs, tag = 'sflag constant byte address 0x0 - dummy sync flag']
  #allocation10 [shape = 's32[]', space=sflag, size = 0x4, offset = 0, fixed_abs, tag = 'sflag constant byte address 0x0 - dummy sync flag']
  #allocation11 [shape = 's32[]', space=sflag, size = 0x4, offset = 0, fixed_abs, tag = 'sflag constant byte address 0x0 - dummy sync flag']
  #allocation12 [shape = 's32[]', space=sflag, size = 0x4, offset = 0, fixed_abs, tag = 'sflag constant byte address 0x0 - dummy sync flag']
  #allocation13 [shape = 's32[]', space=sflag, size = 0x4, offset = 0, fixed_abs, tag = 'sflag constant byte address 0x0 - dummy sync flag']
  #allocation14 [shape = 's32[]', space=sflag, size = 0x4, offset = 0, fixed_abs, tag = 'sflag constant byte address 0x0 - dummy sync flag']
  #allocation15 [shape = 's32[]', space=sflag, size = 0x4, offset = 0, fixed_abs, tag = 'sflag constant byte address 0x0 - dummy sync flag']
  #allocation16 [shape = 's32[]', space=sflag, size = 0x4, offset = 0, fixed_abs, tag = 'sflag constant byte address 0x0 - dummy sync flag']
  #allocation17 [shape = 's32[]', space=sflag, size = 0x4, offset = 0, fixed_abs, tag = 'sflag constant byte address 0x0 - dummy sync flag']
  #allocation18 [shape = 's32[]', space=sflag, size = 0x4, offset = 0, fixed_abs, tag = 'sflag constant byte address 0x0 - dummy sync flag']
  #allocation19 [shape = 's32[]', space=sflag, size = 0x4, offset = 0, fixed_abs, tag = 'sflag constant byte address 0x0 - dummy sync flag']
  #allocation20 [shape = 's32[]', space=sflag, size = 0x4, offset = 0, fixed_abs, tag = 'sflag constant byte address 0x0 - dummy sync flag']
  #allocation21 [shape = 's32[]', space=sflag, size = 0x4, offset = 0, fixed_abs, tag = 'sflag constant byte address 0x0 - dummy sync flag']
  #allocation22 [shape = 's32[]', space=sflag, size = 0x4, offset = 0, fixed_abs, tag = 'sflag constant byte address 0x0 - dummy sync flag']
  %s0 = inlined_call_operand.hbm [shape: s32[4,16], index: 0, kind: input, shape index: {}]
  %s1 = inlined_call_operand.hbm [shape: f32[16,16,256], index: 1, kind: input, shape index: {}]
  %s2 = inlined_call_operand.hbm [shape: f32[4,16,256], index: 2, kind: output, shape index: {}]
  %s3 = sld [smem:[#allocation0]]
  $region25: #{tpu_custom_call.1} parent=0
    _
  %s5 = ssub.s32 1, %s3
  %s6 = scalar_select 0, %s5, %s3
  %s8 = sshll.u32 %s0, 4
  %s9 = int_to_ptr.hbm [resolvable:$true] %s8
  %11 = dma.hbm_to_smem %s9, 64, [#allocation4], [#allocation3]
  %13 = dma.done [#allocation3], 64
  %14 = sfence
  $region1: #{tpu_custom_call.1} parent=0
    #allocation5 [shape = 'u8[32768]{0}', space=vmem, size = 0x8000, scoped, tag = 'output window, operand 0']
    #allocation6 [shape = 's32[2]{0}', space=sflag, size = 0x8, scoped, tag = 'scoped memory for tpu_custom_call.1']
    %15 = vsyncpa [#allocation6], 0
    %s16 = scalar_lea.sflag [#allocation6], 1
    %17 = vsyncpa %s16, 0
    loop: start=0, step=1, limit=5
    $region2: #{tpu_custom_call.1} parent=1 // loop_pre_header
      _
    $region3: #{tpu_custom_call.1} parent=1 // loop_header
      %s19 = sphi 0, %s23
      %p20 = scmp.ge.s32.totalorder %s19, 5
      %s28 = sphi 0, %s30
      %s31 = sphi 0, %s28
      %s41 = sphi 0, %s31
    $region4: #{tpu_custom_call.1} parent=1 // loop_header_branch
      %22 = sbr.rel (%p20) target = $region8
    $region5: #{tpu_custom_call.1} parent=1 // loop_body
      %s24 = ssub.s32 %s19, 1
      %s25 = sadd.s32 %s19, 1
      %s26 = ssub.s32 %s19, %s25
      %p27 = scmp.eq.s32.totalorder %s26, 0
      %s29 = sadd.s32 %s28, 1
      %s30 = scalar_select %p27, %s28, %s29
      %p32 = pneg %p27
      %p33 = scmp.eq.s32.totalorder %s19, 3
      %p34 = por %p32, %p33
      %p35 = scmp.ne.s32.totalorder %s28, %s31
      %p36 = scmp.eq.s32.totalorder %s19, 0
      %p37 = por %p35, %p36
      %p38 = scmp.ne.s32.totalorder %s28, %s31
      %p39 = scmp.eq.s32.totalorder %s24, 3
      %p40 = por %p38, %p39
      %p42 = scmp.ne.s32.totalorder %s31, %s41
      %p43 = scmp.eq.s32.totalorder %s24, 0
      %p44 = por %p42, %p43
      %p45 = scmp.lt.s32.totalorder %s19, 4
      // Predicated region
      $region9: #{tpu_custom_call.1} parent=5 // pred_check
        %p46 = pneg %p45
      $region10: #{tpu_custom_call.1} parent=5 // pred_check_branch
        %48 = sbr.rel (%p46) target = $region12
      $region11: #{tpu_custom_call.1} parent=5 // pred_region
        %p49 = pneg %p37
        %p50 = pneg %p34
        %s51 = sand.u32 %s28, 1
        %s52 = scalar_lea.sflag [#allocation6], %s51
        %s53 = sand.u32 %s28, 1
        %s54 = smul.addr %s53, 32
        %s55 = scalar_lea.vmem [#allocation5], %s54
        %p56 = scmp.lt.s32.totalorder %s19, 3
        %s57 = scalar_select %p56, %s19, 3
        %s58 = smul.u32 %s57, 128
        %s59 = sld [smem:[#allocation4 + %s58]]
        %s60 = smul.u32 %s59, 32
        %s61 = scalar_lea.hbm %s1, %s60
        %s62 = sshll.u32 %s61, 4
        %s63 = int_to_ptr.hbm [resolvable:$true] %s62
        %s64 = sshll.u32 %s55, 4
        %s65 = int_to_ptr.vmem [resolvable:$true] %s64
        %69 = dma.hbm_to_vmem [thread:$0]  %s63, 32, %s65, [#allocation2], 128, 128, 1
        %s70 = sadd.s32 %s58, 1
        %s71 = sld [smem:[#allocation4 + %s70]]
        %s72 = smul.u32 %s71, 32
        %s73 = sadd.s32 1, %s72
        %s74 = scalar_lea.hbm %s1, %s73
        %s75 = scalar_lea.vmem %s55, 1 [#allocation5]
        %s76 = scalar_lea.sflag [#allocation2], 1
        %s77 = sshll.u32 %s74, 4
        %s78 = int_to_ptr.hbm [resolvable:$true] %s77
        %s79 = sshll.u32 %s75, 4
        %s80 = int_to_ptr.vmem [resolvable:$true] %s79
        %84 = dma.hbm_to_vmem [thread:$0]  %s78, 32, %s80, %s76, 128, 128, 1
        %s85 = sadd.s32 %s58, 2
        %s86 = sld [smem:[#allocation4 + %s85]]
        %s87 = smul.u32 %s86, 32
        %s88 = sadd.s32 2, %s87
        %s89 = scalar_lea.hbm %s1, %s88
        %s90 = scalar_lea.vmem %s55, 2 [#allocation5]
        %s91 = scalar_lea.sflag [#allocation2], 2
        %s92 = sshll.u32 %s89, 4
        %s93 = int_to_ptr.hbm [resolvable:$true] %s92
        %s94 = sshll.u32 %s90, 4
        %s95 = int_to_ptr.vmem [resolvable:$true] %s94
        %99 = dma.hbm_to_vmem [thread:$0]  %s93, 32, %s95, %s91, 128, 128, 1
        %s100 = sadd.s32 %s58, 3
        %s101 = sld [smem:[#allocation4 + %s100]]
        %s102 = smul.u32 %s101, 32
        %s103 = sadd.s32 3, %s102
        %s104 = scalar_lea.hbm %s1, %s103
        %s105 = scalar_lea.vmem %s55, 3 [#allocation5]
        %s106 = scalar_lea.sflag [#allocation2], 3
        %s107 = sshll.u32 %s104, 4
        %s108 = int_to_ptr.hbm [resolvable:$true] %s107
        %s109 = sshll.u32 %s105, 4
        %s110 = int_to_ptr.vmem [resolvable:$true] %s109
        %114 = dma.hbm_to_vmem [thread:$0]  %s108, 32, %s110, %s106, 128, 128, 1
        %s115 = sadd.s32 %s58, 4
        %s116 = sld [smem:[#allocation4 + %s115]]
        %s117 = smul.u32 %s116, 32
        %s118 = sadd.s32 4, %s117
        %s119 = scalar_lea.hbm %s1, %s118
        %s120 = scalar_lea.vmem %s55, 4 [#allocation5]
        %s121 = scalar_lea.sflag [#allocation2], 4
        %s122 = sshll.u32 %s119, 4
        %s123 = int_to_ptr.hbm [resolvable:$true] %s122
        %s124 = sshll.u32 %s120, 4
        %s125 = int_to_ptr.vmem [resolvable:$true] %s124
        %129 = dma.hbm_to_vmem [thread:$0]  %s123, 32, %s125, %s121, 128, 128, 1
        %s130 = sadd.s32 %s58, 5
        %s131 = sld [smem:[#allocation4 + %s130]]
        %s132 = smul.u32 %s131, 32
        %s133 = sadd.s32 5, %s132
        %s134 = scalar_lea.hbm %s1, %s133
        %s135 = scalar_lea.vmem %s55, 5 [#allocation5]
        %s136 = scalar_lea.sflag [#allocation2], 5
        %s137 = sshll.u32 %s134, 4
        %s138 = int_to_ptr.hbm [resolvable:$true] %s137
        %s139 = sshll.u32 %s135, 4
        %s140 = int_to_ptr.vmem [resolvable:$true] %s139
        %144 = dma.hbm_to_vmem [thread:$0]  %s138, 32, %s140, %s136, 128, 128, 1
        %s145 = sadd.s32 %s58, 6
        %s146 = sld [smem:[#allocation4 + %s145]]
        %s147 = smul.u32 %s146, 32
        %s148 = sadd.s32 6, %s147
        %s149 = scalar_lea.hbm %s1, %s148
        %s150 = scalar_lea.vmem %s55, 6 [#allocation5]
        %s151 = scalar_lea.sflag [#allocation2], 6
        %s152 = sshll.u32 %s149, 4
        %s153 = int_to_ptr.hbm [resolvable:$true] %s152
        %s154 = sshll.u32 %s150, 4
        %s155 = int_to_ptr.vmem [resolvable:$true] %s154
        %159 = dma.hbm_to_vmem [thread:$0]  %s153, 32, %s155, %s151, 128, 128, 1
        %s160 = sadd.s32 %s58, 7
        %s161 = sld [smem:[#allocation4 + %s160]]
        %s162 = smul.u32 %s161, 32
        %s163 = sadd.s32 7, %s162
        %s164 = scalar_lea.hbm %s1, %s163
        %s165 = scalar_lea.vmem %s55, 7 [#allocation5]
        %s166 = scalar_lea.sflag [#allocation2], 7
        %s167 = sshll.u32 %s164, 4
        %s168 = int_to_ptr.hbm [resolvable:$true] %s167
        %s169 = sshll.u32 %s165, 4
        %s170 = int_to_ptr.vmem [resolvable:$true] %s169
        %174 = dma.hbm_to_vmem [thread:$0]  %s168, 32, %s170, %s166, 128, 128, 1
        %s175 = sadd.s32 %s58, 8
        %s176 = sld [smem:[#allocation4 + %s175]]
        %s177 = smul.u32 %s176, 32
        %s178 = sadd.s32 16, %s177
        %s179 = scalar_lea.hbm %s1, %s178
        %s180 = scalar_lea.vmem %s55, 16 [#allocation5]
        %s181 = scalar_lea.sflag [#allocation2], 8
        %s182 = sshll.u32 %s179, 4
        %s183 = int_to_ptr.hbm [resolvable:$true] %s182
        %s184 = sshll.u32 %s180, 4
        %s185 = int_to_ptr.vmem [resolvable:$true] %s184
        %189 = dma.hbm_to_vmem [thread:$0]  %s183, 32, %s185, %s181, 128, 128, 1
        %s190 = sadd.s32 %s58, 9
        %s191 = sld [smem:[#allocation4 + %s190]]
        %s192 = smul.u32 %s191, 32
        %s193 = sadd.s32 17, %s192
        %s194 = scalar_lea.hbm %s1, %s193
        %s195 = scalar_lea.vmem %s55, 17 [#allocation5]
        %s196 = scalar_lea.sflag [#allocation2], 9
        %s197 = sshll.u32 %s194, 4
        %s198 = int_to_ptr.hbm [resolvable:$true] %s197
        %s199 = sshll.u32 %s195, 4
        %s200 = int_to_ptr.vmem [resolvable:$true] %s199
        %204 = dma.hbm_to_vmem [thread:$0]  %s198, 32, %s200, %s196, 128, 128, 1
        %s205 = sadd.s32 %s58, 10
        %s206 = sld [smem:[#allocation4 + %s205]]
        %s207 = smul.u32 %s206, 32
        %s208 = sadd.s32 18, %s207
        %s209 = scalar_lea.hbm %s1, %s208
        %s210 = scalar_lea.vmem %s55, 18 [#allocation5]
        %s211 = scalar_lea.sflag [#allocation2], 10
        %s212 = sshll.u32 %s209, 4
        %s213 = int_to_ptr.hbm [resolvable:$true] %s212
        %s214 = sshll.u32 %s210, 4
        %s215 = int_to_ptr.vmem [resolvable:$true] %s214
        %219 = dma.hbm_to_vmem [thread:$0]  %s213, 32, %s215, %s211, 128, 128, 1
        %s220 = sadd.s32 %s58, 11
        %s221 = sld [smem:[#allocation4 + %s220]]
        %s222 = smul.u32 %s221, 32
        %s223 = sadd.s32 19, %s222
        %s224 = scalar_lea.hbm %s1, %s223
        %s225 = scalar_lea.vmem %s55, 19 [#allocation5]
        %s226 = scalar_lea.sflag [#allocation2], 11
        %s227 = sshll.u32 %s224, 4
        %s228 = int_to_ptr.hbm [resolvable:$true] %s227
        %s229 = sshll.u32 %s225, 4
        %s230 = int_to_ptr.vmem [resolvable:$true] %s229
        %234 = dma.hbm_to_vmem [thread:$0]  %s228, 32, %s230, %s226, 128, 128, 1
        %s235 = sadd.s32 %s58, 12
        %s236 = sld [smem:[#allocation4 + %s235]]
        %s237 = smul.u32 %s236, 32
        %s238 = sadd.s32 20, %s237
        %s239 = scalar_lea.hbm %s1, %s238
        %s240 = scalar_lea.vmem %s55, 20 [#allocation5]
        %s241 = scalar_lea.sflag [#allocation2], 12
        %s242 = sshll.u32 %s239, 4
        %s243 = int_to_ptr.hbm [resolvable:$true] %s242
        %s244 = sshll.u32 %s240, 4
        %s245 = int_to_ptr.vmem [resolvable:$true] %s244
        %249 = dma.hbm_to_vmem [thread:$0]  %s243, 32, %s245, %s241, 128, 128, 1
        %s250 = sadd.s32 %s58, 13
        %s251 = sld [smem:[#allocation4 + %s250]]
        %s252 = smul.u32 %s251, 32
        %s253 = sadd.s32 21, %s252
        %s254 = scalar_lea.hbm %s1, %s253
        %s255 = scalar_lea.vmem %s55, 21 [#allocation5]
        %s256 = scalar_lea.sflag [#allocation2], 13
        %s257 = sshll.u32 %s254, 4
        %s258 = int_to_ptr.hbm [resolvable:$true] %s257
        %s259 = sshll.u32 %s255, 4
        %s260 = int_to_ptr.vmem [resolvable:$true] %s259
        %264 = dma.hbm_to_vmem [thread:$0]  %s258, 32, %s260, %s256, 128, 128, 1
        %s265 = sadd.s32 %s58, 14
        %s266 = sld [smem:[#allocation4 + %s265]]
        %s267 = smul.u32 %s266, 32
        %s268 = sadd.s32 22, %s267
        %s269 = scalar_lea.hbm %s1, %s268
        %s270 = scalar_lea.vmem %s55, 22 [#allocation5]
        %s271 = scalar_lea.sflag [#allocation2], 14
        %s272 = sshll.u32 %s269, 4
        %s273 = int_to_ptr.hbm [resolvable:$true] %s272
        %s274 = sshll.u32 %s270, 4
        %s275 = int_to_ptr.vmem [resolvable:$true] %s274
        %279 = dma.hbm_to_vmem [thread:$0]  %s273, 32, %s275, %s271, 128, 128, 1
        %s280 = sadd.s32 %s58, 15
        %s281 = sld [smem:[#allocation4 + %s280]]
        %s282 = smul.u32 %s281, 32
        %s283 = sadd.s32 23, %s282
        %s284 = scalar_lea.hbm %s1, %s283
        %s285 = scalar_lea.vmem %s55, 23 [#allocation5]
        %s286 = scalar_lea.sflag [#allocation2], 15
        %s287 = sshll.u32 %s284, 4
        %s288 = int_to_ptr.hbm [resolvable:$true] %s287
        %s289 = sshll.u32 %s285, 4
        %s290 = int_to_ptr.vmem [resolvable:$true] %s289
        %294 = dma.hbm_to_vmem [thread:$0]  %s288, 32, %s290, %s286, 128, 128, 1
        %s295 = smul.u32 1, 2
        %s296 = sshll.u32 %s295, 4
        %297 = dma.done [#allocation2], %s296
        %s298 = sshll.u32 %s295, 4
        %299 = dma.done %s76, %s298
        %s300 = sshll.u32 %s295, 4
        %301 = dma.done %s91, %s300
        %s302 = sshll.u32 %s295, 4
        %303 = dma.done %s106, %s302
        %s304 = sshll.u32 %s295, 4
        %305 = dma.done %s121, %s304
        %s306 = sshll.u32 %s295, 4
        %307 = dma.done %s136, %s306
        %s308 = sshll.u32 %s295, 4
        %309 = dma.done %s151, %s308
        %s310 = sshll.u32 %s295, 4
        %311 = dma.done %s166, %s310
        %s312 = sshll.u32 %s295, 4
        %313 = dma.done %s181, %s312
        %s314 = sshll.u32 %s295, 4
        %315 = dma.done %s196, %s314
        %s316 = sshll.u32 %s295, 4
        %317 = dma.done %s211, %s316
        %s318 = sshll.u32 %s295, 4
        %319 = dma.done %s226, %s318
        %s320 = sshll.u32 %s295, 4
        %321 = dma.done %s241, %s320
        %s322 = sshll.u32 %s295, 4
        %323 = dma.done %s256, %s322
        %s324 = sshll.u32 %s295, 4
        %325 = dma.done %s271, %s324
        %s326 = sshll.u32 %s295, 4
        %327 = dma.done %s286, %s326
        %s328 = sand.u32 %s28, 1
        %s329 = scalar_lea.sflag [#allocation6], %s328
        %s330 = sand.u32 %s28, 1
        %s331 = smul.addr %s330, 32
        %s332 = scalar_lea.vmem [#allocation5], %s331
        // Predicated region
        $region13: #{tpu_custom_call.1} parent=11 // pred_check
          %p333 = pneg %p34
        $region14: #{tpu_custom_call.1} parent=11 // pred_check_branch
          %335 = sbr.rel (%p333) target = $region16
        $region15: #{tpu_custom_call.1} parent=11 // pred_region
          %337 = vsyncadd %s329, 0
          %s338 = smul.addr %s19, 4
          %s339 = smul.addr %s338, 8
          %s340 = scalar_lea.hbm %s2, %s339
          %s341 = sshll.u32 %s332, 4
          %s342 = int_to_ptr.vmem [resolvable:$true] %s341
          %s343 = sshll.u32 %s340, 4
          %s344 = int_to_ptr.hbm [resolvable:$true] %s343
          %349 = dma.vmem_to_hbm [thread:$0]  %s342, 512, %s344, %s329, 256, 256, 16
        $region16: #{tpu_custom_call.1} parent=11 // pred_fallthru
          _
      $region12: #{tpu_custom_call.1} parent=5 // pred_fallthru
        _
      %p350 = scmp.le.s32.totalorder 1, %s19
      // Predicated region
      $region17: #{tpu_custom_call.1} parent=5 // pred_check
        %p351 = pneg %p350
      $region18: #{tpu_custom_call.1} parent=5 // pred_check_branch
        %353 = sbr.rel (%p351) target = $region20
      $region19: #{tpu_custom_call.1} parent=5 // pred_region
        %s354 = ssub.s32 %s19, 1
        // Predicated region
        $region21: #{tpu_custom_call.1} parent=19 // pred_check
          %p355 = pneg %p40
        $region22: #{tpu_custom_call.1} parent=19 // pred_check_branch
          %357 = sbr.rel (%p355) target = $region24
        $region23: #{tpu_custom_call.1} parent=19 // pred_region
          %s358 = sand.u32 %s31, 1
          %s359 = scalar_lea.sflag [#allocation6], %s358
          %s360 = sand.u32 %s31, 1
          %s361 = smul.addr %s360, 32
          %s362 = scalar_lea.vmem [#allocation5], %s361
          %364 = dma.done %s359, 512
        $region24: #{tpu_custom_call.1} parent=19 // pred_fallthru
          _
      $region20: #{tpu_custom_call.1} parent=5 // pred_fallthru
        _
    $region6: #{tpu_custom_call.1} parent=1 // loop_footer
      %s23 = sadd.s32 1, %s19
    $region7: #{tpu_custom_call.1} parent=1 // loop_footer_branch
      %18 = sbr.rel target = $region3
    $region8: #{tpu_custom_call.1} parent=1 // loop_exit
      _
    %365 = vsyncpa [#allocation6], 1
    %s366 = scalar_lea.sflag [#allocation6], 1
    %367 = vsyncpa %s366, 1
  %368 = vsyncmov [#allocation2]
  %s369 = vpop.sfrf %368
  %p370 = scmp.eq.s32.totalorder %s369, 0
  %p371 = pneg %p370
  %373 = shalt.err (%p371)
  %s374 = scalar_lea.sflag [#allocation2], 1
  %375 = vsyncmov %s374
  %s376 = vpop.sfrf %375
  %p377 = scmp.eq.s32.totalorder %s376, 0
  %p378 = pneg %p377
  %380 = shalt.err (%p378)
  %s381 = scalar_lea.sflag [#allocation2], 2
  %382 = vsyncmov %s381
  %s383 = vpop.sfrf %382
  %p384 = scmp.eq.s32.totalorder %s383, 0
  %p385 = pneg %p384
  %387 = shalt.err (%p385)
  %s388 = scalar_lea.sflag [#allocation2], 3
  %389 = vsyncmov %s388
  %s390 = vpop.sfrf %389
  %p391 = scmp.eq.s32.totalorder %s390, 0
  %p392 = pneg %p391
  %394 = shalt.err (%p392)
  %s395 = scalar_lea.sflag [#allocation2], 4
  %396 = vsyncmov %s395
  %s397 = vpop.sfrf %396
  %p398 = scmp.eq.s32.totalorder %s397, 0
  %p399 = pneg %p398
  %401 = shalt.err (%p399)
  %s402 = scalar_lea.sflag [#allocation2], 5
  %403 = vsyncmov %s402
  %s404 = vpop.sfrf %403
  %p405 = scmp.eq.s32.totalorder %s404, 0
  %p406 = pneg %p405
  %408 = shalt.err (%p406)
  %s409 = scalar_lea.sflag [#allocation2], 6
  %410 = vsyncmov %s409
  %s411 = vpop.sfrf %410
  %p412 = scmp.eq.s32.totalorder %s411, 0
  %p413 = pneg %p412
  %415 = shalt.err (%p413)
  %s416 = scalar_lea.sflag [#allocation2], 7
  %417 = vsyncmov %s416
  %s418 = vpop.sfrf %417
  %p419 = scmp.eq.s32.totalorder %s418, 0
  %p420 = pneg %p419
  %422 = shalt.err (%p420)
  %s423 = scalar_lea.sflag [#allocation2], 8
  %424 = vsyncmov %s423
  %s425 = vpop.sfrf %424
  %p426 = scmp.eq.s32.totalorder %s425, 0
  %p427 = pneg %p426
  %429 = shalt.err (%p427)
  %s430 = scalar_lea.sflag [#allocation2], 9
  %431 = vsyncmov %s430
  %s432 = vpop.sfrf %431
  %p433 = scmp.eq.s32.totalorder %s432, 0
  %p434 = pneg %p433
  %436 = shalt.err (%p434)
  %s437 = scalar_lea.sflag [#allocation2], 10
  %438 = vsyncmov %s437
  %s439 = vpop.sfrf %438
  %p440 = scmp.eq.s32.totalorder %s439, 0
  %p441 = pneg %p440
  %443 = shalt.err (%p441)
  %s444 = scalar_lea.sflag [#allocation2], 11
  %445 = vsyncmov %s444
  %s446 = vpop.sfrf %445
  %p447 = scmp.eq.s32.totalorder %s446, 0
  %p448 = pneg %p447
  %450 = shalt.err (%p448)
  %s451 = scalar_lea.sflag [#allocation2], 12
  %452 = vsyncmov %s451
  %s453 = vpop.sfrf %452
  %p454 = scmp.eq.s32.totalorder %s453, 0
  %p455 = pneg %p454
  %457 = shalt.err (%p455)
  %s458 = scalar_lea.sflag [#allocation2], 13
  %459 = vsyncmov %s458
  %s460 = vpop.sfrf %459
  %p461 = scmp.eq.s32.totalorder %s460, 0
  %p462 = pneg %p461
  %464 = shalt.err (%p462)
  %s465 = scalar_lea.sflag [#allocation2], 14
  %466 = vsyncmov %s465
  %s467 = vpop.sfrf %466
  %p468 = scmp.eq.s32.totalorder %s467, 0
  %p469 = pneg %p468
  %471 = shalt.err (%p469)
  %s472 = scalar_lea.sflag [#allocation2], 15
  %473 = vsyncmov %s472
  %s474 = vpop.sfrf %473
  %p475 = scmp.eq.s32.totalorder %s474, 0
  %p476 = pneg %p475
  %478 = shalt.err (%p476)

</llo_original>
